<compile_context>
chip_gen: v6e
topology: v6e:2x2x1
jax: 0.10.0
libtpu: 0.0.40
codegen_flags: <defaults>
</compile_context>

<pallas_src>
import functools

import jax
import jax.numpy as jnp
from jax.experimental import pallas as pl
from jax.experimental.pallas import tpu as pltpu


MATMUL_DTYPE = jnp.bfloat16   # MXU operand dtype (f32 accumulation everywhere)
LN_EPS = 1e-5                 # matches torch.nn.LayerNorm default


# ----------------------------- Pallas kernel -------------------------------

def _layer_norm(x, gamma, beta):
    # f32 LayerNorm over the last dim (biased variance, like torch.nn.LayerNorm).
    mean = jnp.mean(x, axis=-1, keepdims=True)
    centered = x - mean
    var = jnp.mean(centered * centered, axis=-1, keepdims=True)
    return centered * jax.lax.rsqrt(var + LN_EPS) * gamma + beta


def _encoder_layer_kernel(
    x_ref,
    ln1_g_ref, ln1_b_ref,
    wqkv_ref, bqkv_ref,
    wo_ref, bo_ref,
    ln2_g_ref, ln2_b_ref,
    w1_ref, b1_ref,
    w2_ref, b2_ref,
    o_ref,
    *, block_batch, seq_len, num_heads, depth,
):
    d_model = num_heads * depth
    rows = block_batch * seq_len

    x = x_ref[...]                                      # (rows, d_model) f32

    # ---- LayerNorm 1 (f32) ----
    xn = _layer_norm(x, ln1_g_ref[...], ln1_b_ref[...])
    xn_bf = xn.astype(MATMUL_DTYPE)

    # ---- Fused QKV projection: (rows, d_model) @ (d_model, 3*d_model), M = rows ----
    # 1/sqrt(depth) is already folded into the Wq columns / bq (pack_params).
    qkv = jnp.dot(xn_bf, wqkv_ref[...],
                  preferred_element_type=jnp.float32) + bqkv_ref[...]   # (rows, 3*d_model)

    # ---- Scaled dot-product attention + per-head output projection ----
    # No lane concat of heads: each head's context hits its Wo row-slab
    # (sublane-aligned slice) and is accumulated into one f32 accumulator.
    attn = jnp.zeros((rows, d_model), jnp.float32)
    for h in range(num_heads):                          # static unroll (num_heads small)
        q_h = qkv[:, h * depth:(h + 1) * depth]
        k_h = qkv[:, d_model + h * depth: d_model + (h + 1) * depth]
        v_h = qkv[:, 2 * d_model + h * depth: 2 * d_model + (h + 1) * depth]

        ctx_parts = []
        for b in range(block_batch):                    # attention is batch-local
            rs = slice(b * seq_len, (b + 1) * seq_len)  # sublane-aligned (seq_len % 8 == 0)
            qb = q_h[rs].astype(MATMUL_DTYPE)           # (S, depth)
            kb = k_h[rs].astype(MATMUL_DTYPE)
            vb = v_h[rs].astype(MATMUL_DTYPE)
            # Contract last dims of q and k directly -> no k.T materialization.
            s = jax.lax.dot_general(
                qb, kb, (((1,), (1,)), ((), ())),
                preferred_element_type=jnp.float32)     # (S, S)
            # TODO(synk): apply additive mask (mask * -1e9) here if ever needed.
            m = jnp.max(s, axis=-1, keepdims=True)
            p = jnp.exp(s - m)
            p = p * pl.reciprocal(jnp.sum(p, axis=-1, keepdims=True), approx=True)
            ctx_parts.append(jnp.dot(p.astype(MATMUL_DTYPE), vb,
                                     preferred_element_type=jnp.float32))  # (S, depth)
        ctx_h = ctx_parts[0] if block_batch == 1 else jnp.concatenate(ctx_parts, axis=0)

        # Per-head slice of Wo rows is sublane-aligned; accumulate in f32.
        attn = attn + jnp.dot(ctx_h.astype(MATMUL_DTYPE),
                              wo_ref[h * depth:(h + 1) * depth, :],
                              preferred_element_type=jnp.float32)          # (rows, d_model)

    # ---- Output bias + residual ----
    x1 = x + attn + bo_ref[...]

    # ---- LayerNorm 2 + position-wise FFN + residual ----
    x2 = _layer_norm(x1, ln2_g_ref[...], ln2_b_ref[...])
    h1 = jnp.dot(x2.astype(MATMUL_DTYPE), w1_ref[...],
                 preferred_element_type=jnp.float32) + b1_ref[...]
    h1 = jnp.maximum(h1, 0.0)                           # ReLU
    ffn = jnp.dot(h1.astype(MATMUL_DTYPE), w2_ref[...],
                  preferred_element_type=jnp.float32) + b2_ref[...]

    o_ref[...] = (x1 + ffn).astype(o_ref.dtype)


# ------------------------------ Wrapper ------------------------------------

def encoder_layer(packed, x, *, num_heads):
    """x: (B, S, d_model) f32 -> (B, S, d_model) f32. Single fused pallas_call."""
    B, S, d_model = x.shape
    assert d_model % num_heads == 0
    assert S % 8 == 0, "sequence length must be sublane-aligned"
    depth = d_model // num_heads
    (ln1_g, ln1_b, wqkv, bqkv, wo, bo, ln2_g, ln2_b, w1, b1, w2, b2) = packed
    d_ff = w1.shape[1]

    # Row aggregation: pick the largest whole-batch group with ~<=256 rows per step
    # so every matmul's M dimension is as large as possible (feedback item 1).
    target_rows = 256
    block_batch = 1
    for cand in range(B, 0, -1):
        if B % cand == 0 and cand * S <= max(S, target_rows):
            block_batch = cand
            break
    rows = block_batch * S
    grid = (B // block_batch,)

    x2d = x.reshape(B * S, d_model)   # free XLA reshape; rows = (b, s) flattened

    kernel = functools.partial(_encoder_layer_kernel,
                               block_batch=block_batch, seq_len=S,
                               num_heads=num_heads, depth=depth)

    row_map = lambda i: (i, 0)
    const = lambda i: (0, 0)          # weights: same block every step -> fetched once

    out2d = pl.pallas_call(
        kernel,
        out_shape=jax.ShapeDtypeStruct((B * S, d_model), jnp.float32),
        grid=grid,
        in_specs=[
            pl.BlockSpec((rows, d_model), row_map),            # x rows
            pl.BlockSpec((1, d_model), const),                 # ln1 gamma
            pl.BlockSpec((1, d_model), const),                 # ln1 beta
            pl.BlockSpec((d_model, 3 * d_model), const),       # fused Wqkv (bf16, q scaled)
            pl.BlockSpec((1, 3 * d_model), const),             # fused bqkv (f32)
            pl.BlockSpec((d_model, d_model), const),           # Wo (bf16)
            pl.BlockSpec((1, d_model), const),                 # bo
            pl.BlockSpec((1, d_model), const),                 # ln2 gamma
            pl.BlockSpec((1, d_model), const),                 # ln2 beta
            pl.BlockSpec((d_model, d_ff), const),              # W1 (bf16)
            pl.BlockSpec((1, d_ff), const),                    # b1
            pl.BlockSpec((d_ff, d_model), const),              # W2 (bf16)
            pl.BlockSpec((1, d_model), const),                 # b2
        ],
        out_specs=pl.BlockSpec((rows, d_model), row_map),
        compiler_params=pltpu.CompilerParams(
            dimension_semantics=("parallel",),                 # row-block axis -> both TCs
            vmem_limit_bytes=48 * 1024 * 1024,                 # <=64 MiB v7x; slack on v5e/v6e
        ),
    )(x2d, ln1_g, ln1_b, wqkv, bqkv, wo, bo, ln2_g, ln2_b, w1, b1, w2, b2)
    return out2d.reshape(B, S, d_model)


# --------------------------- Params & packing -------------------------------

def init_encoder_params(key, d_model, d_ff):
    """PyTorch-layout params: Linear W is (out, in), b is (out,); LN gamma/beta."""
    def linear(k, fan_in, fan_out):
        bound = 1.0 / jnp.sqrt(jnp.float32(fan_in))
        kw, kb = jax.random.split(k)
        w = jax.random.uniform(kw, (fan_out, fan_in), jnp.float32, -bound, bound)
        b = jax.random.uniform(kb, (fan_out,), jnp.float32, -bound, bound)
        return w, b

    keys = jax.random.split(key, 6)
    return {
        "wq": linear(keys[0], d_model, d_model),
        "wk": linear(keys[1], d_model, d_model),
        "wv": linear(keys[2], d_model, d_model),
        "dense": linear(keys[3], d_model, d_model),
        "ffn1": linear(keys[4], d_model, d_ff),
        "ffn2": linear(keys[5], d_ff, d_model),
        "ln1": (jnp.ones((d_model,), jnp.float32), jnp.zeros((d_model,), jnp.float32)),
        "ln2": (jnp.ones((d_model,), jnp.float32), jnp.zeros((d_model,), jnp.float32)),
    }


def pack_params(params, *, num_heads):
    """One-time prep (off the hot path): transpose PyTorch (out,in) weights to (in,out),
    fold 1/sqrt(depth) into the Wq columns / bq, concatenate Wq/Wk/Wv into a fused QKV
    weight, cast matmul weights to bf16 (halves weight DMA, MXU-native); biases / LN
    params stay f32."""
    d_model = params["wq"][0].shape[1]
    depth = d_model // num_heads
    scale = float(depth) ** -0.5

    def wt(name, col_scale=None):
        w, b = params[name]
        w = w.T.astype(jnp.float32)
        b = b.reshape(1, -1).astype(jnp.float32)
        if col_scale is not None:
            w = w * col_scale
            b = b * col_scale
        return w.astype(MATMUL_DTYPE), b

    wq, bq = wt("wq", scale)          # scale folded here, not in the kernel
    wk, bk = wt("wk")
    wv, bv = wt("wv")
    wqkv = jnp.concatenate([wq, wk, wv], axis=1)        # (d_model, 3*d_model)
    bqkv = jnp.concatenate([bq, bk, bv], axis=1)        # (1, 3*d_model)
    wo, bo = wt("dense")
    w1, b1 = wt("ffn1")
    w2, b2 = wt("ffn2")
    ln1_g, ln1_b = (p.reshape(1, -1) for p in params["ln1"])
    ln2_g, ln2_b = (p.reshape(1, -1) for p in params["ln2"])
    return (ln1_g, ln1_b, wqkv, bqkv, wo, bo, ln2_g, ln2_b, w1, b1, w2, b2)


# ----------------------- Pure-JAX reference (checking) ----------------------

def _encoder_layer_reference(packed, x, *, num_heads):
    """Pure-JAX mirror of the kernel math (same bf16 operand casts, exact softmax)."""
    (ln1_g, ln1_b, wqkv, bqkv, wo, bo, ln2_g, ln2_b, w1, b1, w2, b2) = packed
    B, S, d_model = x.shape
    depth = d_model // num_heads

    def ln(v, g, b):
        m = jnp.mean(v, axis=-1, keepdims=True)
        c = v - m
        var = jnp.mean(c * c, axis=-1, keepdims=True)
        return c * jax.lax.rsqrt(var + LN_EPS) * g + b

    xn = ln(x, ln1_g, ln1_b)
    qkv = jnp.einsum("bsd,df->bsf", xn.astype(MATMUL_DTYPE), wqkv,
                     preferred_element_type=jnp.float32) + bqkv
    q, k, v = jnp.split(qkv, 3, axis=-1)     # q already scaled (folded into wqkv)

    def split_heads(t):
        return t.reshape(B, S, num_heads, depth).transpose(0, 2, 1, 3)

    qh = split_heads(q).astype(MATMUL_DTYPE)
    kh = split_heads(k).astype(MATMUL_DTYPE)
    vh = split_heads(v).astype(MATMUL_DTYPE)
    s = jnp.einsum("bhqd,bhkd->bhqk", qh, kh, preferred_element_type=jnp.float32)
    p = jax.nn.softmax(s, axis=-1)
    o = jnp.einsum("bhqk,bhkd->bhqd", p.astype(MATMUL_DTYPE), vh,
                   preferred_element_type=jnp.float32)
    concat = o.transpose(0, 2, 1, 3).reshape(B, S, d_model)
    attn = jnp.einsum("bsd,df->bsf", concat.astype(MATMUL_DTYPE), wo,
                      preferred_element_type=jnp.float32) + bo
    x1 = x + attn
    x2 = ln(x1, ln2_g, ln2_b)
    h = jnp.maximum(jnp.einsum("bsd,df->bsf", x2.astype(MATMUL_DTYPE), w1,
                               preferred_element_type=jnp.float32) + b1, 0.0)
    ffn = jnp.einsum("bsf,fd->bsd", h.astype(MATMUL_DTYPE), w2,
                     preferred_element_type=jnp.float32) + b2
    return x1 + ffn


# --------------------------------- Main -------------------------------------

if __name__ == "__main__":
    d_model, num_heads, d_ff = 32, 4, 128
    B, S = 2, 8

    key = jax.random.PRNGKey(0)
    kp, kx = jax.random.split(key)
    params = init_encoder_params(kp, d_model, d_ff)
    packed = pack_params(params, num_heads=num_heads)

    x = jax.random.normal(kx, (B, S, d_model), jnp.float32)

    out = encoder_layer(packed, x, num_heads=num_heads)
    jax.block_until_ready(out)
    assert out.shape == (B, S, d_model)

    # Sanity check against a pure-JAX reference (same bf16 operand casts; kernel only
    # differs by approx-reciprocal softmax normalization and accumulation order).
    ref = _encoder_layer_reference(packed, x, num_heads=num_heads)
    err = jnp.abs(out - ref)
    tol = 2e-2 + 2e-2 * jnp.abs(ref)
    max_err = float(jnp.max(err))
    assert bool(jnp.all(err <= tol)), f"kernel/reference mismatch: max abs err {max_err}"

    print("KERNEL_OK")
</pallas_src>

<mosaic_0001>
module attributes {stable_mosaic.version = 11 : i64} {
  func.func @_encoder_layer_kernel(%arg0: i32, %arg1: memref<16x32xf32, #tpu.memory_space<vmem>>, %arg2: memref<1x32xf32, #tpu.memory_space<vmem>>, %arg3: memref<1x32xf32, #tpu.memory_space<vmem>>, %arg4: memref<32x96xbf16, #tpu.memory_space<vmem>>, %arg5: memref<1x96xf32, #tpu.memory_space<vmem>>, %arg6: memref<32x32xbf16, #tpu.memory_space<vmem>>, %arg7: memref<1x32xf32, #tpu.memory_space<vmem>>, %arg8: memref<1x32xf32, #tpu.memory_space<vmem>>, %arg9: memref<1x32xf32, #tpu.memory_space<vmem>>, %arg10: memref<32x128xbf16, #tpu.memory_space<vmem>>, %arg11: memref<1x128xf32, #tpu.memory_space<vmem>>, %arg12: memref<128x32xbf16, #tpu.memory_space<vmem>>, %arg13: memref<1x32xf32, #tpu.memory_space<vmem>>, %arg14: memref<16x32xf32, #tpu.memory_space<vmem>>) attributes {dimension_semantics = [#tpu.dimension_semantics<parallel>], iteration_bounds = array<i64: 1>, scalar_prefetch = 0 : i64, scratch_operands = 0 : i64, tpu.core_type = #tpu.core_type<tc>, window_params = [{transform_indices = @transform_0, window_bounds = array<i64: 16, 32>}, {pipeline_mode = #tpu.pipeline_mode<synchronous>, transform_indices = @transform_1, window_bounds = array<i64: 1, 32>}, {pipeline_mode = #tpu.pipeline_mode<synchronous>, transform_indices = @transform_2, window_bounds = array<i64: 1, 32>}, {pipeline_mode = #tpu.pipeline_mode<synchronous>, transform_indices = @transform_3, window_bounds = array<i64: 32, 96>}, {pipeline_mode = #tpu.pipeline_mode<synchronous>, transform_indices = @transform_4, window_bounds = array<i64: 1, 96>}, {pipeline_mode = #tpu.pipeline_mode<synchronous>, transform_indices = @transform_5, window_bounds = array<i64: 32, 32>}, {pipeline_mode = #tpu.pipeline_mode<synchronous>, transform_indices = @transform_6, window_bounds = array<i64: 1, 32>}, {pipeline_mode = #tpu.pipeline_mode<synchronous>, transform_indices = @transform_7, window_bounds = array<i64: 1, 32>}, {pipeline_mode = #tpu.pipeline_mode<synchronous>, transform_indices = @transform_8, window_bounds = array<i64: 1, 32>}, {pipeline_mode = #tpu.pipeline_mode<synchronous>, transform_indices = @transform_9, window_bounds = array<i64: 32, 128>}, {pipeline_mode = #tpu.pipeline_mode<synchronous>, transform_indices = @transform_10, window_bounds = array<i64: 1, 128>}, {pipeline_mode = #tpu.pipeline_mode<synchronous>, transform_indices = @transform_11, window_bounds = array<i64: 128, 32>}, {pipeline_mode = #tpu.pipeline_mode<synchronous>, transform_indices = @transform_12, window_bounds = array<i64: 1, 32>}, {transform_indices = @transform_13, window_bounds = array<i64: 16, 32>}]} {
    %c0 = arith.constant 0 : index
    %c0_0 = arith.constant 0 : index
    %0 = vector.load %arg1[%c0, %c0_0] : memref<16x32xf32, #tpu.memory_space<vmem>>, vector<16x32xf32>
    %c0_1 = arith.constant 0 : index
    %c0_2 = arith.constant 0 : index
    %1 = vector.load %arg2[%c0_1, %c0_2] : memref<1x32xf32, #tpu.memory_space<vmem>>, vector<1x32xf32>
    %c0_3 = arith.constant 0 : index
    %c0_4 = arith.constant 0 : index
    %2 = vector.load %arg3[%c0_3, %c0_4] : memref<1x32xf32, #tpu.memory_space<vmem>>, vector<1x32xf32>
    %cst = arith.constant dense<0.000000e+00> : vector<16xf32>
    %3 = vector.multi_reduction <add>, %0, %cst [1] : vector<16x32xf32> to vector<16xf32>
    %4 = vector.shape_cast %3 : vector<16xf32> to vector<16x1xf32>
    %cst_5 = arith.constant 3.200000e+01 : f32
    %5 = vector.broadcast %cst_5 : f32 to vector<16x1xf32>
    %6 = arith.divf %4, %5 : vector<16x1xf32>
    %7 = vector.broadcast %6 : vector<16x1xf32> to vector<16x32xf32>
    %8 = arith.subf %0, %7 : vector<16x32xf32>
    %9 = arith.mulf %8, %8 : vector<16x32xf32>
    %cst_6 = arith.constant dense<0.000000e+00> : vector<16xf32>
    %10 = vector.multi_reduction <add>, %9, %cst_6 [1] : vector<16x32xf32> to vector<16xf32>
    %11 = vector.shape_cast %10 : vector<16xf32> to vector<16x1xf32>
    %cst_7 = arith.constant 3.200000e+01 : f32
    %12 = vector.broadcast %cst_7 : f32 to vector<16x1xf32>
    %13 = arith.divf %11, %12 : vector<16x1xf32>
    %cst_8 = arith.constant 9.99999974E-6 : f32
    %14 = vector.broadcast %cst_8 : f32 to vector<16x1xf32>
    %15 = arith.addf %13, %14 : vector<16x1xf32>
    %16 = math.rsqrt %15 : vector<16x1xf32>
    %17 = vector.broadcast %16 : vector<16x1xf32> to vector<16x32xf32>
    %18 = arith.mulf %8, %17 : vector<16x32xf32>
    %19 = vector.broadcast %1 : vector<1x32xf32> to vector<16x32xf32>
    %20 = arith.mulf %18, %19 : vector<16x32xf32>
    %21 = vector.broadcast %2 : vector<1x32xf32> to vector<16x32xf32>
    %22 = arith.addf %20, %21 : vector<16x32xf32>
    %23 = arith.truncf %22 : vector<16x32xf32> to vector<16x32xbf16>
    %c0_9 = arith.constant 0 : index
    %c0_10 = arith.constant 0 : index
    %24 = vector.load %arg4[%c0_9, %c0_10] : memref<32x96xbf16, #tpu.memory_space<vmem>>, vector<32x96xbf16>
    %cst_11 = arith.constant dense<0.000000e+00> : vector<16x96xf32>
    %25 = tpu.matmul %23, %24, %cst_11 {dimension_numbers = #tpu.dot_dimension_numbers<[1], [0], [0], [1], [0, 0, 1, 1], [], []>} : vector<16x32xbf16>, vector<32x96xbf16>, vector<16x96xf32> -> vector<16x96xf32>
    %c0_12 = arith.constant 0 : index
    %c0_13 = arith.constant 0 : index
    %26 = vector.load %arg5[%c0_12, %c0_13] : memref<1x96xf32, #tpu.memory_space<vmem>>, vector<1x96xf32>
    %27 = vector.broadcast %26 : vector<1x96xf32> to vector<16x96xf32>
    %28 = arith.addf %25, %27 : vector<16x96xf32>
    %cst_14 = arith.constant 0.000000e+00 : f32
    %29 = vector.broadcast %cst_14 : f32 to vector<16x32xf32>
    %30 = vector.extract_strided_slice %28 {offsets = [0, 0], sizes = [16, 8], strides = [1, 1]} : vector<16x96xf32> to vector<16x8xf32>
    %31 = vector.extract_strided_slice %28 {offsets = [0, 32], sizes = [16, 8], strides = [1, 1]} : vector<16x96xf32> to vector<16x8xf32>
    %32 = vector.extract_strided_slice %28 {offsets = [0, 64], sizes = [16, 8], strides = [1, 1]} : vector<16x96xf32> to vector<16x8xf32>
    %33 = vector.extract_strided_slice %30 {offsets = [0, 0], sizes = [8, 8], strides = [1, 1]} : vector<16x8xf32> to vector<8x8xf32>
    %34 = arith.truncf %33 : vector<8x8xf32> to vector<8x8xbf16>
    %35 = vector.extract_strided_slice %31 {offsets = [0, 0], sizes = [8, 8], strides = [1, 1]} : vector<16x8xf32> to vector<8x8xf32>
    %36 = arith.truncf %35 : vector<8x8xf32> to vector<8x8xbf16>
    %37 = vector.extract_strided_slice %32 {offsets = [0, 0], sizes = [8, 8], strides = [1, 1]} : vector<16x8xf32> to vector<8x8xf32>
    %38 = arith.truncf %37 : vector<8x8xf32> to vector<8x8xbf16>
    %cst_15 = arith.constant dense<0.000000e+00> : vector<8x8xf32>
    %39 = tpu.matmul %34, %36, %cst_15 {dimension_numbers = #tpu.dot_dimension_numbers<[1], [1], [0], [0], [0, 0, 1, 0], [], []>} : vector<8x8xbf16>, vector<8x8xbf16>, vector<8x8xf32> -> vector<8x8xf32>
    %cst_16 = arith.constant dense<0xFF800000> : vector<8xf32>
    %40 = vector.multi_reduction <maximumf>, %39, %cst_16 [1] : vector<8x8xf32> to vector<8xf32>
    %41 = vector.shape_cast %40 : vector<8xf32> to vector<8x1xf32>
    %42 = vector.broadcast %41 : vector<8x1xf32> to vector<8x8xf32>
    %43 = arith.subf %39, %42 : vector<8x8xf32>
    %44 = math.exp %43 : vector<8x8xf32>
    %cst_17 = arith.constant dense<0.000000e+00> : vector<8xf32>
    %45 = vector.multi_reduction <add>, %44, %cst_17 [1] : vector<8x8xf32> to vector<8xf32>
    %46 = vector.shape_cast %45 : vector<8xf32> to vector<8x1xf32>
    %47 = tpu.reciprocal %46 {approx = true} : vector<8x1xf32> -> vector<8x1xf32>
    %48 = vector.broadcast %47 : vector<8x1xf32> to vector<8x8xf32>
    %49 = arith.mulf %44, %48 : vector<8x8xf32>
    %50 = arith.truncf %49 : vector<8x8xf32> to vector<8x8xbf16>
    %cst_18 = arith.constant dense<0.000000e+00> : vector<8x8xf32>
    %51 = tpu.matmul %50, %38, %cst_18 {dimension_numbers = #tpu.dot_dimension_numbers<[1], [0], [0], [1], [0, 0, 1, 1], [], []>} : vector<8x8xbf16>, vector<8x8xbf16>, vector<8x8xf32> -> vector<8x8xf32>
    %52 = vector.extract_strided_slice %30 {offsets = [8, 0], sizes = [8, 8], strides = [1, 1]} : vector<16x8xf32> to vector<8x8xf32>
    %53 = arith.truncf %52 : vector<8x8xf32> to vector<8x8xbf16>
    %54 = vector.extract_strided_slice %31 {offsets = [8, 0], sizes = [8, 8], strides = [1, 1]} : vector<16x8xf32> to vector<8x8xf32>
    %55 = arith.truncf %54 : vector<8x8xf32> to vector<8x8xbf16>
    %56 = vector.extract_strided_slice %32 {offsets = [8, 0], sizes = [8, 8], strides = [1, 1]} : vector<16x8xf32> to vector<8x8xf32>
    %57 = arith.truncf %56 : vector<8x8xf32> to vector<8x8xbf16>
    %cst_19 = arith.constant dense<0.000000e+00> : vector<8x8xf32>
    %58 = tpu.matmul %53, %55, %cst_19 {dimension_numbers = #tpu.dot_dimension_numbers<[1], [1], [0], [0], [0, 0, 1, 0], [], []>} : vector<8x8xbf16>, vector<8x8xbf16>, vector<8x8xf32> -> vector<8x8xf32>
    %cst_20 = arith.constant dense<0xFF800000> : vector<8xf32>
    %59 = vector.multi_reduction <maximumf>, %58, %cst_20 [1] : vector<8x8xf32> to vector<8xf32>
    %60 = vector.shape_cast %59 : vector<8xf32> to vector<8x1xf32>
    %61 = vector.broadcast %60 : vector<8x1xf32> to vector<8x8xf32>
    %62 = arith.subf %58, %61 : vector<8x8xf32>
    %63 = math.exp %62 : vector<8x8xf32>
    %cst_21 = arith.constant dense<0.000000e+00> : vector<8xf32>
    %64 = vector.multi_reduction <add>, %63, %cst_21 [1] : vector<8x8xf32> to vector<8xf32>
    %65 = vector.shape_cast %64 : vector<8xf32> to vector<8x1xf32>
    %66 = tpu.reciprocal %65 {approx = true} : vector<8x1xf32> -> vector<8x1xf32>
    %67 = vector.broadcast %66 : vector<8x1xf32> to vector<8x8xf32>
    %68 = arith.mulf %63, %67 : vector<8x8xf32>
    %69 = arith.truncf %68 : vector<8x8xf32> to vector<8x8xbf16>
    %cst_22 = arith.constant dense<0.000000e+00> : vector<8x8xf32>
    %70 = tpu.matmul %69, %57, %cst_22 {dimension_numbers = #tpu.dot_dimension_numbers<[1], [0], [0], [1], [0, 0, 1, 1], [], []>} : vector<8x8xbf16>, vector<8x8xbf16>, vector<8x8xf32> -> vector<8x8xf32>
    %71 = tpu.concatenate %51, %70 in 0 : vector<8x8xf32>, vector<8x8xf32> -> vector<16x8xf32>
    %72 = arith.truncf %71 : vector<16x8xf32> to vector<16x8xbf16>
    %c0_23 = arith.constant 0 : index
    %c0_24 = arith.constant 0 : index
    %73 = vector.load %arg6[%c0_23, %c0_24] : memref<32x32xbf16, #tpu.memory_space<vmem>>, vector<8x32xbf16>
    %cst_25 = arith.constant dense<0.000000e+00> : vector<16x32xf32>
    %74 = tpu.matmul %72, %73, %cst_25 {dimension_numbers = #tpu.dot_dimension_numbers<[1], [0], [0], [1], [0, 0, 1, 1], [], []>} : vector<16x8xbf16>, vector<8x32xbf16>, vector<16x32xf32> -> vector<16x32xf32>
    %75 = arith.addf %29, %74 : vector<16x32xf32>
    %76 = vector.extract_strided_slice %28 {offsets = [0, 8], sizes = [16, 8], strides = [1, 1]} : vector<16x96xf32> to vector<16x8xf32>
    %77 = vector.extract_strided_slice %28 {offsets = [0, 40], sizes = [16, 8], strides = [1, 1]} : vector<16x96xf32> to vector<16x8xf32>
    %78 = vector.extract_strided_slice %28 {offsets = [0, 72], sizes = [16, 8], strides = [1, 1]} : vector<16x96xf32> to vector<16x8xf32>
    %79 = vector.extract_strided_slice %76 {offsets = [0, 0], sizes = [8, 8], strides = [1, 1]} : vector<16x8xf32> to vector<8x8xf32>
    %80 = arith.truncf %79 : vector<8x8xf32> to vector<8x8xbf16>
    %81 = vector.extract_strided_slice %77 {offsets = [0, 0], sizes = [8, 8], strides = [1, 1]} : vector<16x8xf32> to vector<8x8xf32>
    %82 = arith.truncf %81 : vector<8x8xf32> to vector<8x8xbf16>
    %83 = vector.extract_strided_slice %78 {offsets = [0, 0], sizes = [8, 8], strides = [1, 1]} : vector<16x8xf32> to vector<8x8xf32>
    %84 = arith.truncf %83 : vector<8x8xf32> to vector<8x8xbf16>
    %cst_26 = arith.constant dense<0.000000e+00> : vector<8x8xf32>
    %85 = tpu.matmul %80, %82, %cst_26 {dimension_numbers = #tpu.dot_dimension_numbers<[1], [1], [0], [0], [0, 0, 1, 0], [], []>} : vector<8x8xbf16>, vector<8x8xbf16>, vector<8x8xf32> -> vector<8x8xf32>
    %cst_27 = arith.constant dense<0xFF800000> : vector<8xf32>
    %86 = vector.multi_reduction <maximumf>, %85, %cst_27 [1] : vector<8x8xf32> to vector<8xf32>
    %87 = vector.shape_cast %86 : vector<8xf32> to vector<8x1xf32>
    %88 = vector.broadcast %87 : vector<8x1xf32> to vector<8x8xf32>
    %89 = arith.subf %85, %88 : vector<8x8xf32>
    %90 = math.exp %89 : vector<8x8xf32>
    %cst_28 = arith.constant dense<0.000000e+00> : vector<8xf32>
    %91 = vector.multi_reduction <add>, %90, %cst_28 [1] : vector<8x8xf32> to vector<8xf32>
    %92 = vector.shape_cast %91 : vector<8xf32> to vector<8x1xf32>
    %93 = tpu.reciprocal %92 {approx = true} : vector<8x1xf32> -> vector<8x1xf32>
    %94 = vector.broadcast %93 : vector<8x1xf32> to vector<8x8xf32>
    %95 = arith.mulf %90, %94 : vector<8x8xf32>
    %96 = arith.truncf %95 : vector<8x8xf32> to vector<8x8xbf16>
    %cst_29 = arith.constant dense<0.000000e+00> : vector<8x8xf32>
    %97 = tpu.matmul %96, %84, %cst_29 {dimension_numbers = #tpu.dot_dimension_numbers<[1], [0], [0], [1], [0, 0, 1, 1], [], []>} : vector<8x8xbf16>, vector<8x8xbf16>, vector<8x8xf32> -> vector<8x8xf32>
    %98 = vector.extract_strided_slice %76 {offsets = [8, 0], sizes = [8, 8], strides = [1, 1]} : vector<16x8xf32> to vector<8x8xf32>
    %99 = arith.truncf %98 : vector<8x8xf32> to vector<8x8xbf16>
    %100 = vector.extract_strided_slice %77 {offsets = [8, 0], sizes = [8, 8], strides = [1, 1]} : vector<16x8xf32> to vector<8x8xf32>
    %101 = arith.truncf %100 : vector<8x8xf32> to vector<8x8xbf16>
    %102 = vector.extract_strided_slice %78 {offsets = [8, 0], sizes = [8, 8], strides = [1, 1]} : vector<16x8xf32> to vector<8x8xf32>
    %103 = arith.truncf %102 : vector<8x8xf32> to vector<8x8xbf16>
    %cst_30 = arith.constant dense<0.000000e+00> : vector<8x8xf32>
    %104 = tpu.matmul %99, %101, %cst_30 {dimension_numbers = #tpu.dot_dimension_numbers<[1], [1], [0], [0], [0, 0, 1, 0], [], []>} : vector<8x8xbf16>, vector<8x8xbf16>, vector<8x8xf32> -> vector<8x8xf32>
    %cst_31 = arith.constant dense<0xFF800000> : vector<8xf32>
    %105 = vector.multi_reduction <maximumf>, %104, %cst_31 [1] : vector<8x8xf32> to vector<8xf32>
    %106 = vector.shape_cast %105 : vector<8xf32> to vector<8x1xf32>
    %107 = vector.broadcast %106 : vector<8x1xf32> to vector<8x8xf32>
    %108 = arith.subf %104, %107 : vector<8x8xf32>
    %109 = math.exp %108 : vector<8x8xf32>
    %cst_32 = arith.constant dense<0.000000e+00> : vector<8xf32>
    %110 = vector.multi_reduction <add>, %109, %cst_32 [1] : vector<8x8xf32> to vector<8xf32>
    %111 = vector.shape_cast %110 : vector<8xf32> to vector<8x1xf32>
    %112 = tpu.reciprocal %111 {approx = true} : vector<8x1xf32> -> vector<8x1xf32>
    %113 = vector.broadcast %112 : vector<8x1xf32> to vector<8x8xf32>
    %114 = arith.mulf %109, %113 : vector<8x8xf32>
    %115 = arith.truncf %114 : vector<8x8xf32> to vector<8x8xbf16>
    %cst_33 = arith.constant dense<0.000000e+00> : vector<8x8xf32>
    %116 = tpu.matmul %115, %103, %cst_33 {dimension_numbers = #tpu.dot_dimension_numbers<[1], [0], [0], [1], [0, 0, 1, 1], [], []>} : vector<8x8xbf16>, vector<8x8xbf16>, vector<8x8xf32> -> vector<8x8xf32>
    %117 = tpu.concatenate %97, %116 in 0 : vector<8x8xf32>, vector<8x8xf32> -> vector<16x8xf32>
    %118 = arith.truncf %117 : vector<16x8xf32> to vector<16x8xbf16>
    %c8 = arith.constant 8 : index
    %c0_34 = arith.constant 0 : index
    %119 = vector.load %arg6[%c8, %c0_34] : memref<32x32xbf16, #tpu.memory_space<vmem>>, vector<8x32xbf16>
    %cst_35 = arith.constant dense<0.000000e+00> : vector<16x32xf32>
    %120 = tpu.matmul %118, %119, %cst_35 {dimension_numbers = #tpu.dot_dimension_numbers<[1], [0], [0], [1], [0, 0, 1, 1], [], []>} : vector<16x8xbf16>, vector<8x32xbf16>, vector<16x32xf32> -> vector<16x32xf32>
    %121 = arith.addf %75, %120 : vector<16x32xf32>
    %122 = vector.extract_strided_slice %28 {offsets = [0, 16], sizes = [16, 8], strides = [1, 1]} : vector<16x96xf32> to vector<16x8xf32>
    %123 = vector.extract_strided_slice %28 {offsets = [0, 48], sizes = [16, 8], strides = [1, 1]} : vector<16x96xf32> to vector<16x8xf32>
    %124 = vector.extract_strided_slice %28 {offsets = [0, 80], sizes = [16, 8], strides = [1, 1]} : vector<16x96xf32> to vector<16x8xf32>
    %125 = vector.extract_strided_slice %122 {offsets = [0, 0], sizes = [8, 8], strides = [1, 1]} : vector<16x8xf32> to vector<8x8xf32>
    %126 = arith.truncf %125 : vector<8x8xf32> to vector<8x8xbf16>
    %127 = vector.extract_strided_slice %123 {offsets = [0, 0], sizes = [8, 8], strides = [1, 1]} : vector<16x8xf32> to vector<8x8xf32>
    %128 = arith.truncf %127 : vector<8x8xf32> to vector<8x8xbf16>
    %129 = vector.extract_strided_slice %124 {offsets = [0, 0], sizes = [8, 8], strides = [1, 1]} : vector<16x8xf32> to vector<8x8xf32>
    %130 = arith.truncf %129 : vector<8x8xf32> to vector<8x8xbf16>
    %cst_36 = arith.constant dense<0.000000e+00> : vector<8x8xf32>
    %131 = tpu.matmul %126, %128, %cst_36 {dimension_numbers = #tpu.dot_dimension_numbers<[1], [1], [0], [0], [0, 0, 1, 0], [], []>} : vector<8x8xbf16>, vector<8x8xbf16>, vector<8x8xf32> -> vector<8x8xf32>
    %cst_37 = arith.constant dense<0xFF800000> : vector<8xf32>
    %132 = vector.multi_reduction <maximumf>, %131, %cst_37 [1] : vector<8x8xf32> to vector<8xf32>
    %133 = vector.shape_cast %132 : vector<8xf32> to vector<8x1xf32>
    %134 = vector.broadcast %133 : vector<8x1xf32> to vector<8x8xf32>
    %135 = arith.subf %131, %134 : vector<8x8xf32>
    %136 = math.exp %135 : vector<8x8xf32>
    %cst_38 = arith.constant dense<0.000000e+00> : vector<8xf32>
    %137 = vector.multi_reduction <add>, %136, %cst_38 [1] : vector<8x8xf32> to vector<8xf32>
    %138 = vector.shape_cast %137 : vector<8xf32> to vector<8x1xf32>
    %139 = tpu.reciprocal %138 {approx = true} : vector<8x1xf32> -> vector<8x1xf32>
    %140 = vector.broadcast %139 : vector<8x1xf32> to vector<8x8xf32>
    %141 = arith.mulf %136, %140 : vector<8x8xf32>
    %142 = arith.truncf %141 : vector<8x8xf32> to vector<8x8xbf16>
    %cst_39 = arith.constant dense<0.000000e+00> : vector<8x8xf32>
    %143 = tpu.matmul %142, %130, %cst_39 {dimension_numbers = #tpu.dot_dimension_numbers<[1], [0], [0], [1], [0, 0, 1, 1], [], []>} : vector<8x8xbf16>, vector<8x8xbf16>, vector<8x8xf32> -> vector<8x8xf32>
    %144 = vector.extract_strided_slice %122 {offsets = [8, 0], sizes = [8, 8], strides = [1, 1]} : vector<16x8xf32> to vector<8x8xf32>
    %145 = arith.truncf %144 : vector<8x8xf32> to vector<8x8xbf16>
    %146 = vector.extract_strided_slice %123 {offsets = [8, 0], sizes = [8, 8], strides = [1, 1]} : vector<16x8xf32> to vector<8x8xf32>
    %147 = arith.truncf %146 : vector<8x8xf32> to vector<8x8xbf16>
    %148 = vector.extract_strided_slice %124 {offsets = [8, 0], sizes = [8, 8], strides = [1, 1]} : vector<16x8xf32> to vector<8x8xf32>
    %149 = arith.truncf %148 : vector<8x8xf32> to vector<8x8xbf16>
    %cst_40 = arith.constant dense<0.000000e+00> : vector<8x8xf32>
    %150 = tpu.matmul %145, %147, %cst_40 {dimension_numbers = #tpu.dot_dimension_numbers<[1], [1], [0], [0], [0, 0, 1, 0], [], []>} : vector<8x8xbf16>, vector<8x8xbf16>, vector<8x8xf32> -> vector<8x8xf32>
    %cst_41 = arith.constant dense<0xFF800000> : vector<8xf32>
    %151 = vector.multi_reduction <maximumf>, %150, %cst_41 [1] : vector<8x8xf32> to vector<8xf32>
    %152 = vector.shape_cast %151 : vector<8xf32> to vector<8x1xf32>
    %153 = vector.broadcast %152 : vector<8x1xf32> to vector<8x8xf32>
    %154 = arith.subf %150, %153 : vector<8x8xf32>
    %155 = math.exp %154 : vector<8x8xf32>
    %cst_42 = arith.constant dense<0.000000e+00> : vector<8xf32>
    %156 = vector.multi_reduction <add>, %155, %cst_42 [1] : vector<8x8xf32> to vector<8xf32>
    %157 = vector.shape_cast %156 : vector<8xf32> to vector<8x1xf32>
    %158 = tpu.reciprocal %157 {approx = true} : vector<8x1xf32> -> vector<8x1xf32>
    %159 = vector.broadcast %158 : vector<8x1xf32> to vector<8x8xf32>
    %160 = arith.mulf %155, %159 : vector<8x8xf32>
    %161 = arith.truncf %160 : vector<8x8xf32> to vector<8x8xbf16>
    %cst_43 = arith.constant dense<0.000000e+00> : vector<8x8xf32>
    %162 = tpu.matmul %161, %149, %cst_43 {dimension_numbers = #tpu.dot_dimension_numbers<[1], [0], [0], [1], [0, 0, 1, 1], [], []>} : vector<8x8xbf16>, vector<8x8xbf16>, vector<8x8xf32> -> vector<8x8xf32>
    %163 = tpu.concatenate %143, %162 in 0 : vector<8x8xf32>, vector<8x8xf32> -> vector<16x8xf32>
    %164 = arith.truncf %163 : vector<16x8xf32> to vector<16x8xbf16>
    %c16 = arith.constant 16 : index
    %c0_44 = arith.constant 0 : index
    %165 = vector.load %arg6[%c16, %c0_44] : memref<32x32xbf16, #tpu.memory_space<vmem>>, vector<8x32xbf16>
    %cst_45 = arith.constant dense<0.000000e+00> : vector<16x32xf32>
    %166 = tpu.matmul %164, %165, %cst_45 {dimension_numbers = #tpu.dot_dimension_numbers<[1], [0], [0], [1], [0, 0, 1, 1], [], []>} : vector<16x8xbf16>, vector<8x32xbf16>, vector<16x32xf32> -> vector<16x32xf32>
    %167 = arith.addf %121, %166 : vector<16x32xf32>
    %168 = vector.extract_strided_slice %28 {offsets = [0, 24], sizes = [16, 8], strides = [1, 1]} : vector<16x96xf32> to vector<16x8xf32>
    %169 = vector.extract_strided_slice %28 {offsets = [0, 56], sizes = [16, 8], strides = [1, 1]} : vector<16x96xf32> to vector<16x8xf32>
    %170 = vector.extract_strided_slice %28 {offsets = [0, 88], sizes = [16, 8], strides = [1, 1]} : vector<16x96xf32> to vector<16x8xf32>
    %171 = vector.extract_strided_slice %168 {offsets = [0, 0], sizes = [8, 8], strides = [1, 1]} : vector<16x8xf32> to vector<8x8xf32>
    %172 = arith.truncf %171 : vector<8x8xf32> to vector<8x8xbf16>
    %173 = vector.extract_strided_slice %169 {offsets = [0, 0], sizes = [8, 8], strides = [1, 1]} : vector<16x8xf32> to vector<8x8xf32>
    %174 = arith.truncf %173 : vector<8x8xf32> to vector<8x8xbf16>
    %175 = vector.extract_strided_slice %170 {offsets = [0, 0], sizes = [8, 8], strides = [1, 1]} : vector<16x8xf32> to vector<8x8xf32>
    %176 = arith.truncf %175 : vector<8x8xf32> to vector<8x8xbf16>
    %cst_46 = arith.constant dense<0.000000e+00> : vector<8x8xf32>
    %177 = tpu.matmul %172, %174, %cst_46 {dimension_numbers = #tpu.dot_dimension_numbers<[1], [1], [0], [0], [0, 0, 1, 0], [], []>} : vector<8x8xbf16>, vector<8x8xbf16>, vector<8x8xf32> -> vector<8x8xf32>
    %cst_47 = arith.constant dense<0xFF800000> : vector<8xf32>
    %178 = vector.multi_reduction <maximumf>, %177, %cst_47 [1] : vector<8x8xf32> to vector<8xf32>
    %179 = vector.shape_cast %178 : vector<8xf32> to vector<8x1xf32>
    %180 = vector.broadcast %179 : vector<8x1xf32> to vector<8x8xf32>
    %181 = arith.subf %177, %180 : vector<8x8xf32>
    %182 = math.exp %181 : vector<8x8xf32>
    %cst_48 = arith.constant dense<0.000000e+00> : vector<8xf32>
    %183 = vector.multi_reduction <add>, %182, %cst_48 [1] : vector<8x8xf32> to vector<8xf32>
    %184 = vector.shape_cast %183 : vector<8xf32> to vector<8x1xf32>
    %185 = tpu.reciprocal %184 {approx = true} : vector<8x1xf32> -> vector<8x1xf32>
    %186 = vector.broadcast %185 : vector<8x1xf32> to vector<8x8xf32>
    %187 = arith.mulf %182, %186 : vector<8x8xf32>
    %188 = arith.truncf %187 : vector<8x8xf32> to vector<8x8xbf16>
    %cst_49 = arith.constant dense<0.000000e+00> : vector<8x8xf32>
    %189 = tpu.matmul %188, %176, %cst_49 {dimension_numbers = #tpu.dot_dimension_numbers<[1], [0], [0], [1], [0, 0, 1, 1], [], []>} : vector<8x8xbf16>, vector<8x8xbf16>, vector<8x8xf32> -> vector<8x8xf32>
    %190 = vector.extract_strided_slice %168 {offsets = [8, 0], sizes = [8, 8], strides = [1, 1]} : vector<16x8xf32> to vector<8x8xf32>
    %191 = arith.truncf %190 : vector<8x8xf32> to vector<8x8xbf16>
    %192 = vector.extract_strided_slice %169 {offsets = [8, 0], sizes = [8, 8], strides = [1, 1]} : vector<16x8xf32> to vector<8x8xf32>
    %193 = arith.truncf %192 : vector<8x8xf32> to vector<8x8xbf16>
    %194 = vector.extract_strided_slice %170 {offsets = [8, 0], sizes = [8, 8], strides = [1, 1]} : vector<16x8xf32> to vector<8x8xf32>
    %195 = arith.truncf %194 : vector<8x8xf32> to vector<8x8xbf16>
    %cst_50 = arith.constant dense<0.000000e+00> : vector<8x8xf32>
    %196 = tpu.matmul %191, %193, %cst_50 {dimension_numbers = #tpu.dot_dimension_numbers<[1], [1], [0], [0], [0, 0, 1, 0], [], []>} : vector<8x8xbf16>, vector<8x8xbf16>, vector<8x8xf32> -> vector<8x8xf32>
    %cst_51 = arith.constant dense<0xFF800000> : vector<8xf32>
    %197 = vector.multi_reduction <maximumf>, %196, %cst_51 [1] : vector<8x8xf32> to vector<8xf32>
    %198 = vector.shape_cast %197 : vector<8xf32> to vector<8x1xf32>
    %199 = vector.broadcast %198 : vector<8x1xf32> to vector<8x8xf32>
    %200 = arith.subf %196, %199 : vector<8x8xf32>
    %201 = math.exp %200 : vector<8x8xf32>
    %cst_52 = arith.constant dense<0.000000e+00> : vector<8xf32>
    %202 = vector.multi_reduction <add>, %201, %cst_52 [1] : vector<8x8xf32> to vector<8xf32>
    %203 = vector.shape_cast %202 : vector<8xf32> to vector<8x1xf32>
    %204 = tpu.reciprocal %203 {approx = true} : vector<8x1xf32> -> vector<8x1xf32>
    %205 = vector.broadcast %204 : vector<8x1xf32> to vector<8x8xf32>
    %206 = arith.mulf %201, %205 : vector<8x8xf32>
    %207 = arith.truncf %206 : vector<8x8xf32> to vector<8x8xbf16>
    %cst_53 = arith.constant dense<0.000000e+00> : vector<8x8xf32>
    %208 = tpu.matmul %207, %195, %cst_53 {dimension_numbers = #tpu.dot_dimension_numbers<[1], [0], [0], [1], [0, 0, 1, 1], [], []>} : vector<8x8xbf16>, vector<8x8xbf16>, vector<8x8xf32> -> vector<8x8xf32>
    %209 = tpu.concatenate %189, %208 in 0 : vector<8x8xf32>, vector<8x8xf32> -> vector<16x8xf32>
    %210 = arith.truncf %209 : vector<16x8xf32> to vector<16x8xbf16>
    %c24 = arith.constant 24 : index
    %c0_54 = arith.constant 0 : index
    %211 = vector.load %arg6[%c24, %c0_54] : memref<32x32xbf16, #tpu.memory_space<vmem>>, vector<8x32xbf16>
    %cst_55 = arith.constant dense<0.000000e+00> : vector<16x32xf32>
    %212 = tpu.matmul %210, %211, %cst_55 {dimension_numbers = #tpu.dot_dimension_numbers<[1], [0], [0], [1], [0, 0, 1, 1], [], []>} : vector<16x8xbf16>, vector<8x32xbf16>, vector<16x32xf32> -> vector<16x32xf32>
    %213 = arith.addf %167, %212 : vector<16x32xf32>
    %214 = arith.addf %0, %213 : vector<16x32xf32>
    %c0_56 = arith.constant 0 : index
    %c0_57 = arith.constant 0 : index
    %215 = vector.load %arg7[%c0_56, %c0_57] : memref<1x32xf32, #tpu.memory_space<vmem>>, vector<1x32xf32>
    %216 = vector.broadcast %215 : vector<1x32xf32> to vector<16x32xf32>
    %217 = arith.addf %214, %216 : vector<16x32xf32>
    %c0_58 = arith.constant 0 : index
    %c0_59 = arith.constant 0 : index
    %218 = vector.load %arg8[%c0_58, %c0_59] : memref<1x32xf32, #tpu.memory_space<vmem>>, vector<1x32xf32>
    %c0_60 = arith.constant 0 : index
    %c0_61 = arith.constant 0 : index
    %219 = vector.load %arg9[%c0_60, %c0_61] : memref<1x32xf32, #tpu.memory_space<vmem>>, vector<1x32xf32>
    %cst_62 = arith.constant dense<0.000000e+00> : vector<16xf32>
    %220 = vector.multi_reduction <add>, %217, %cst_62 [1] : vector<16x32xf32> to vector<16xf32>
    %221 = vector.shape_cast %220 : vector<16xf32> to vector<16x1xf32>
    %cst_63 = arith.constant 3.200000e+01 : f32
    %222 = vector.broadcast %cst_63 : f32 to vector<16x1xf32>
    %223 = arith.divf %221, %222 : vector<16x1xf32>
    %224 = vector.broadcast %223 : vector<16x1xf32> to vector<16x32xf32>
    %225 = arith.subf %217, %224 : vector<16x32xf32>
    %226 = arith.mulf %225, %225 : vector<16x32xf32>
    %cst_64 = arith.constant dense<0.000000e+00> : vector<16xf32>
    %227 = vector.multi_reduction <add>, %226, %cst_64 [1] : vector<16x32xf32> to vector<16xf32>
    %228 = vector.shape_cast %227 : vector<16xf32> to vector<16x1xf32>
    %cst_65 = arith.constant 3.200000e+01 : f32
    %229 = vector.broadcast %cst_65 : f32 to vector<16x1xf32>
    %230 = arith.divf %228, %229 : vector<16x1xf32>
    %cst_66 = arith.constant 9.99999974E-6 : f32
    %231 = vector.broadcast %cst_66 : f32 to vector<16x1xf32>
    %232 = arith.addf %230, %231 : vector<16x1xf32>
    %233 = math.rsqrt %232 : vector<16x1xf32>
    %234 = vector.broadcast %233 : vector<16x1xf32> to vector<16x32xf32>
    %235 = arith.mulf %225, %234 : vector<16x32xf32>
    %236 = vector.broadcast %218 : vector<1x32xf32> to vector<16x32xf32>
    %237 = arith.mulf %235, %236 : vector<16x32xf32>
    %238 = vector.broadcast %219 : vector<1x32xf32> to vector<16x32xf32>
    %239 = arith.addf %237, %238 : vector<16x32xf32>
    %240 = arith.truncf %239 : vector<16x32xf32> to vector<16x32xbf16>
    %c0_67 = arith.constant 0 : index
    %c0_68 = arith.constant 0 : index
    %241 = vector.load %arg10[%c0_67, %c0_68] : memref<32x128xbf16, #tpu.memory_space<vmem>>, vector<32x128xbf16>
    %cst_69 = arith.constant dense<0.000000e+00> : vector<16x128xf32>
    %242 = tpu.matmul %240, %241, %cst_69 {dimension_numbers = #tpu.dot_dimension_numbers<[1], [0], [0], [1], [0, 0, 1, 1], [], []>} : vector<16x32xbf16>, vector<32x128xbf16>, vector<16x128xf32> -> vector<16x128xf32>
    %c0_70 = arith.constant 0 : index
    %c0_71 = arith.constant 0 : index
    %243 = vector.load %arg11[%c0_70, %c0_71] : memref<1x128xf32, #tpu.memory_space<vmem>>, vector<1x128xf32>
    %244 = vector.broadcast %243 : vector<1x128xf32> to vector<16x128xf32>
    %245 = arith.addf %242, %244 : vector<16x128xf32>
    %cst_72 = arith.constant 0.000000e+00 : f32
    %246 = vector.broadcast %cst_72 : f32 to vector<16x128xf32>
    %247 = arith.maximumf %245, %246 : vector<16x128xf32>
    %248 = arith.truncf %247 : vector<16x128xf32> to vector<16x128xbf16>
    %c0_73 = arith.constant 0 : index
    %c0_74 = arith.constant 0 : index
    %249 = vector.load %arg12[%c0_73, %c0_74] : memref<128x32xbf16, #tpu.memory_space<vmem>>, vector<128x32xbf16>
    %cst_75 = arith.constant dense<0.000000e+00> : vector<16x32xf32>
    %250 = tpu.matmul %248, %249, %cst_75 {dimension_numbers = #tpu.dot_dimension_numbers<[1], [0], [0], [1], [0, 0, 1, 1], [], []>} : vector<16x128xbf16>, vector<128x32xbf16>, vector<16x32xf32> -> vector<16x32xf32>
    %c0_76 = arith.constant 0 : index
    %c0_77 = arith.constant 0 : index
    %251 = vector.load %arg13[%c0_76, %c0_77] : memref<1x32xf32, #tpu.memory_space<vmem>>, vector<1x32xf32>
    %252 = vector.broadcast %251 : vector<1x32xf32> to vector<16x32xf32>
    %253 = arith.addf %250, %252 : vector<16x32xf32>
    %254 = arith.addf %217, %253 : vector<16x32xf32>
    %c0_78 = arith.constant 0 : index
    %c0_79 = arith.constant 0 : index
    %255 = vector.load %arg14[%c0_78, %c0_79] : memref<16x32xf32, #tpu.memory_space<vmem>>, vector<16x32xf32>
    tpu.vector_store %arg14[%c0_78, %c0_79], %254 {strides = array<i32>} : memref<16x32xf32, #tpu.memory_space<vmem>>, vector<16x32xf32>,
    return
  }
  func.func @transform_0(%arg0: i32) -> (i32, i32) {
    %c0_i32 = arith.constant 0 : i32
    %c0_i32_0 = arith.constant 0 : i32
    return %arg0, %c0_i32 : i32, i32
  }
  func.func @transform_1(%arg0: i32) -> (i32, i32) {
    %c0_i32 = arith.constant 0 : i32
    %c0_i32_0 = arith.constant 0 : i32
    %c0_i32_1 = arith.constant 0 : i32
    return %c0_i32, %c0_i32_0 : i32, i32
  }
  func.func @transform_2(%arg0: i32) -> (i32, i32) {
    %c0_i32 = arith.constant 0 : i32
    %c0_i32_0 = arith.constant 0 : i32
    %c0_i32_1 = arith.constant 0 : i32
    return %c0_i32, %c0_i32_0 : i32, i32
  }
  func.func @transform_3(%arg0: i32) -> (i32, i32) {
    %c0_i32 = arith.constant 0 : i32
    %c0_i32_0 = arith.constant 0 : i32
    %c0_i32_1 = arith.constant 0 : i32
    return %c0_i32, %c0_i32_0 : i32, i32
  }
  func.func @transform_4(%arg0: i32) -> (i32, i32) {
    %c0_i32 = arith.constant 0 : i32
    %c0_i32_0 = arith.constant 0 : i32
    %c0_i32_1 = arith.constant 0 : i32
    return %c0_i32, %c0_i32_0 : i32, i32
  }
  func.func @transform_5(%arg0: i32) -> (i32, i32) {
    %c0_i32 = arith.constant 0 : i32
    %c0_i32_0 = arith.constant 0 : i32
    %c0_i32_1 = arith.constant 0 : i32
    return %c0_i32, %c0_i32_0 : i32, i32
  }
  func.func @transform_6(%arg0: i32) -> (i32, i32) {
    %c0_i32 = arith.constant 0 : i32
    %c0_i32_0 = arith.constant 0 : i32
    %c0_i32_1 = arith.constant 0 : i32
    return %c0_i32, %c0_i32_0 : i32, i32
  }
  func.func @transform_7(%arg0: i32) -> (i32, i32) {
    %c0_i32 = arith.constant 0 : i32
    %c0_i32_0 = arith.constant 0 : i32
    %c0_i32_1 = arith.constant 0 : i32
    return %c0_i32, %c0_i32_0 : i32, i32
  }
  func.func @transform_8(%arg0: i32) -> (i32, i32) {
    %c0_i32 = arith.constant 0 : i32
    %c0_i32_0 = arith.constant 0 : i32
    %c0_i32_1 = arith.constant 0 : i32
    return %c0_i32, %c0_i32_0 : i32, i32
  }
  func.func @transform_9(%arg0: i32) -> (i32, i32) {
    %c0_i32 = arith.constant 0 : i32
    %c0_i32_0 = arith.constant 0 : i32
    %c0_i32_1 = arith.constant 0 : i32
    return %c0_i32, %c0_i32_0 : i32, i32
  }
  func.func @transform_10(%arg0: i32) -> (i32, i32) {
    %c0_i32 = arith.constant 0 : i32
    %c0_i32_0 = arith.constant 0 : i32
    %c0_i32_1 = arith.constant 0 : i32
    return %c0_i32, %c0_i32_0 : i32, i32
  }
  func.func @transform_11(%arg0: i32) -> (i32, i32) {
    %c0_i32 = arith.constant 0 : i32
    %c0_i32_0 = arith.constant 0 : i32
    %c0_i32_1 = arith.constant 0 : i32
    return %c0_i32, %c0_i32_0 : i32, i32
  }
  func.func @transform_12(%arg0: i32) -> (i32, i32) {
    %c0_i32 = arith.constant 0 : i32
    %c0_i32_0 = arith.constant 0 : i32
    %c0_i32_1 = arith.constant 0 : i32
    return %c0_i32, %c0_i32_0 : i32, i32
  }
  func.func @transform_13(%arg0: i32) -> (i32, i32) {
    %c0_i32 = arith.constant 0 : i32
    %c0_i32_0 = arith.constant 0 : i32
    return %arg0, %c0_i32 : i32, i32
  }
}

</mosaic_0001>

<llo_original>
// kernel: tpu_custom_call.1
$region0: #{tpu_custom_call.1}
  #allocation0 [shape = 'u32[]', space=smem, size = 0x4, offset = 0x4, fixed_abs, tag = 'smem constant byte address 0x4 - core index']
  #allocation1 [shape = 'u32[144,128]{1,0:T(1,128)}', space=vmem, size = 0x12000, scoped, tag = 'internal scratch']
  %s0 = inlined_call_operand.vmem [shape: f32[16,32], index: 0, kind: input, shape index: {}]
  %s1 = inlined_call_operand.vmem [shape: f32[1,32], index: 1, kind: input, shape index: {}]
  %s2 = inlined_call_operand.vmem [shape: f32[1,32], index: 2, kind: input, shape index: {}]
  %s3 = inlined_call_operand.vmem [shape: bf16[32,96], index: 3, kind: input, shape index: {}]
  %s4 = inlined_call_operand.vmem [shape: f32[1,96], index: 4, kind: input, shape index: {}]
  %s5 = inlined_call_operand.vmem [shape: bf16[32,32], index: 5, kind: input, shape index: {}]
  %s6 = inlined_call_operand.vmem [shape: f32[1,32], index: 6, kind: input, shape index: {}]
  %s7 = inlined_call_operand.vmem [shape: f32[1,32], index: 7, kind: input, shape index: {}]
  %s8 = inlined_call_operand.vmem [shape: f32[1,32], index: 8, kind: input, shape index: {}]
  %s9 = inlined_call_operand.vmem [shape: bf16[32,128], index: 9, kind: input, shape index: {}]
  %s10 = inlined_call_operand.vmem [shape: f32[1,128], index: 10, kind: input, shape index: {}]
  %s11 = inlined_call_operand.vmem [shape: bf16[128,32], index: 11, kind: input, shape index: {}]
  %s12 = inlined_call_operand.vmem [shape: f32[1,32], index: 12, kind: input, shape index: {}]
  %s13 = inlined_call_operand.hbm [shape: f32[16,32], index: 13, kind: output, shape index: {}]
  %s14 = sld [smem:[#allocation0]]
  $region62: #{tpu_custom_call.1} parent=0
    _
  %s16 = ssub.s32 1, %s14
  %s17 = scalar_select 0, %s16, %s14
  $region1: #{tpu_custom_call.1} parent=0
    #allocation2 [shape = 'u8[8192]{0}', space=vmem, size = 0x2000, scoped, tag = 'output window, operand 0, single buffered']
    #allocation3 [shape = 's32[1]{0}', space=sflag, size = 0x4, scoped, tag = 'scoped memory for tpu_custom_call.1']
    %18 = vsyncpa [#allocation3], 0
    // Predicated region
    $region2: #{tpu_custom_call.1} parent=1 // pred_check
      _
    $region3: #{tpu_custom_call.1} parent=1 // pred_check_branch
      %20 = sbr.rel (0) target = $region5
    $region4: #{tpu_custom_call.1} parent=1 // pred_region
      _
    $region5: #{tpu_custom_call.1} parent=1 // pred_fallthru
      _
    // Predicated region
    $region6: #{tpu_custom_call.1} parent=1 // pred_check
      _
    $region7: #{tpu_custom_call.1} parent=1 // pred_check_branch
      %22 = sbr.rel (0) target = $region9
    $region8: #{tpu_custom_call.1} parent=1 // pred_region
      _
    $region9: #{tpu_custom_call.1} parent=1 // pred_fallthru
      _
    // Predicated region
    $region10: #{tpu_custom_call.1} parent=1 // pred_check
      _
    $region11: #{tpu_custom_call.1} parent=1 // pred_check_branch
      %24 = sbr.rel (0) target = $region13
    $region12: #{tpu_custom_call.1} parent=1 // pred_region
      _
    $region13: #{tpu_custom_call.1} parent=1 // pred_fallthru
      _
    // Predicated region
    $region14: #{tpu_custom_call.1} parent=1 // pred_check
      _
    $region15: #{tpu_custom_call.1} parent=1 // pred_check_branch
      %26 = sbr.rel (0) target = $region17
    $region16: #{tpu_custom_call.1} parent=1 // pred_region
      _
    $region17: #{tpu_custom_call.1} parent=1 // pred_fallthru
      _
    // Predicated region
    $region18: #{tpu_custom_call.1} parent=1 // pred_check
      _
    $region19: #{tpu_custom_call.1} parent=1 // pred_check_branch
      %28 = sbr.rel (0) target = $region21
    $region20: #{tpu_custom_call.1} parent=1 // pred_region
      _
    $region21: #{tpu_custom_call.1} parent=1 // pred_fallthru
      _
    // Predicated region
    $region22: #{tpu_custom_call.1} parent=1 // pred_check
      _
    $region23: #{tpu_custom_call.1} parent=1 // pred_check_branch
      %30 = sbr.rel (0) target = $region25
    $region24: #{tpu_custom_call.1} parent=1 // pred_region
      _
    $region25: #{tpu_custom_call.1} parent=1 // pred_fallthru
      _
    // Predicated region
    $region26: #{tpu_custom_call.1} parent=1 // pred_check
      _
    $region27: #{tpu_custom_call.1} parent=1 // pred_check_branch
      %32 = sbr.rel (0) target = $region29
    $region28: #{tpu_custom_call.1} parent=1 // pred_region
      _
    $region29: #{tpu_custom_call.1} parent=1 // pred_fallthru
      _
    // Predicated region
    $region30: #{tpu_custom_call.1} parent=1 // pred_check
      _
    $region31: #{tpu_custom_call.1} parent=1 // pred_check_branch
      %34 = sbr.rel (0) target = $region33
    $region32: #{tpu_custom_call.1} parent=1 // pred_region
      _
    $region33: #{tpu_custom_call.1} parent=1 // pred_fallthru
      _
    // Predicated region
    $region34: #{tpu_custom_call.1} parent=1 // pred_check
      _
    $region35: #{tpu_custom_call.1} parent=1 // pred_check_branch
      %36 = sbr.rel (0) target = $region37
    $region36: #{tpu_custom_call.1} parent=1 // pred_region
      _
    $region37: #{tpu_custom_call.1} parent=1 // pred_fallthru
      _
    // Predicated region
    $region38: #{tpu_custom_call.1} parent=1 // pred_check
      _
    $region39: #{tpu_custom_call.1} parent=1 // pred_check_branch
      %38 = sbr.rel (0) target = $region41
    $region40: #{tpu_custom_call.1} parent=1 // pred_region
      _
    $region41: #{tpu_custom_call.1} parent=1 // pred_fallthru
      _
    // Predicated region
    $region42: #{tpu_custom_call.1} parent=1 // pred_check
      _
    $region43: #{tpu_custom_call.1} parent=1 // pred_check_branch
      %40 = sbr.rel (0) target = $region45
    $region44: #{tpu_custom_call.1} parent=1 // pred_region
      _
    $region45: #{tpu_custom_call.1} parent=1 // pred_fallthru
      _
    // Predicated region
    $region46: #{tpu_custom_call.1} parent=1 // pred_check
      _
    $region47: #{tpu_custom_call.1} parent=1 // pred_check_branch
      %42 = sbr.rel (0) target = $region49
    $region48: #{tpu_custom_call.1} parent=1 // pred_region
      _
    $region49: #{tpu_custom_call.1} parent=1 // pred_fallthru
      _
    // Predicated region
    $region50: #{tpu_custom_call.1} parent=1 // pred_check
      _
    $region51: #{tpu_custom_call.1} parent=1 // pred_check_branch
      %44 = sbr.rel (0) target = $region53
    $region52: #{tpu_custom_call.1} parent=1 // pred_region
      _
    $region53: #{tpu_custom_call.1} parent=1 // pred_fallthru
      _
    %v46 = vld [vmem:[%s0] sm:$0xff]
    %v47 = vld [vmem:[%s0 + $0x8] sm:$0xff]
    %v48 = vld [vmem:[%s1] sm:$0x1]
    %v49 = vld [vmem:[%s2] sm:$0x1]
    %vm50 = vcmask 261120
    %v51 = vsel %vm50, %v46, 0.0
    %52 = vadd.xlane.f32.xlu0 %v51
    %v53 = vpop.xlane.xlu0 %52
    %v54 = vsel %vm50, %v47, 0.0
    %55 = vadd.xlane.f32.xlu0 %v54
    %v56 = vpop.xlane.xlu0 %55
    %v57 = vrcp.pop 32.0
    %v58 = vmul.f32 %v53, %v57
    %v59 = vmul.f32 %v56, %v57
    %v60 = vsub.f32 %v46, %v58
    %v61 = vsub.f32 %v47, %v59
    %v62 = vmul.f32 %v60, %v60
    %v63 = vmul.f32 %v61, %v61
    %v64 = vsel %vm50, %v62, 0.0
    %65 = vadd.xlane.f32.xlu0 %v64
    %v66 = vpop.xlane.xlu0 %65
    %v67 = vsel %vm50, %v63, 0.0
    %68 = vadd.xlane.f32.xlu0 %v67
    %v69 = vpop.xlane.xlu0 %68
    %v70 = vmul.f32 %v66, %v57
    %v71 = vmul.f32 %v69, %v57
    %v72 = vadd.f32 %v70, 1e-05
    %v73 = vadd.f32 %v71, 1e-05
    %v74 = vrsqrt.pop %v72
    %v75 = vrsqrt.pop %v73
    %v76 = vmul.f32 %v60, %v74
    %v77 = vmul.f32 %v61, %v75
    %v79 = vlaneseq
    %v80 = vshrl.u32 %v79, 7
    %v81 = vsub.s32 0, %v80
    %v82 = vrot.slane %v48, %v81
    %v84 = vmul.f32 %v76, %v82
    %v85 = vmul.f32 %v77, %v82
    %v87 = vlaneseq
    %v88 = vshrl.u32 %v87, 7
    %v89 = vsub.s32 0, %v88
    %v90 = vrot.slane %v49, %v89
    %v92 = vadd.f32 %v84, %v90
    %v93 = vadd.f32 %v85, %v90
    %v94 = vpack.c.bf16 %v93, %v92
    %v95 = vld [vmem:[%s3] sm:$0xf]
    %v96 = vld [vmem:[%s3 + $0x4] sm:$0xf]
    %v97 = vld [vmem:[%s3 + $0x8] sm:$0xf]
    %v98 = vld [vmem:[%s3 + $0xc] sm:$0xf]
    %v99 = vld [vmem:[%s4] sm:$0x1]
    %v101 = vlaneseq
    %v102 = vshrl.u32 %v101, 7
    %v103 = vsub.s32 0, %v102
    %v104 = vrot.slane %v99, %v103
    %v110 = vunpack.c.l.b16 %v95
    %v111 = vunpack.c.l.b16 %v96
    %v112 = vunpack.c.l.b16 %v97
    %v113 = vunpack.c.l.b16 %v98
    %v114 = vpack.c.b16 %v111, %v110
    %v115 = vpack.c.b16 %v113, %v112
    %v119 = vsel %vm50, %v94, 0
    %121 = vmatprep.subr.bf16.mxu0 0
    %122 = vmatpush1.bf16.msra.mxu0 0
    %123 = vmatprep.subr.bf16.mxu0 0
    %124 = vmatpush1.bf16.msra.mxu0 0
    %125 = vmatprep.subr.bf16.mxu0 0
    %126 = vmatpush1.bf16.msra.mxu0 0
    %127 = vmatprep.subr.bf16.mxu0 0
    %128 = vmatpush1.bf16.msra.mxu0 0
    %129 = vmatprep.subr.bf16.mxu0 0
    %130 = vmatpush1.bf16.msra.mxu0 0
    %131 = vmatprep.subr.bf16.mxu0 0
    %132 = vmatpush1.bf16.msra.mxu0 0
    %133 = vmatprep.subr.bf16.mxu0 0
    %134 = vmatpush1.bf16.msra.mxu0 %v115
    %135 = vmatprep.subr.bf16.mxu0 0
    %136 = vmatpush1.bf16.msra.mxu0 %v114
    %137 = vmatprep.subr.bf16.mxu0 0
    %138 = vmatpush2.bf16.msra.mxu0 0
    %139 = vmatprep.subr.bf16.mxu0 0
    %140 = vmatpush2.bf16.msra.mxu0 0
    %141 = vmatprep.subr.bf16.mxu0 0
    %142 = vmatpush2.bf16.msra.mxu0 0
    %143 = vmatprep.subr.bf16.mxu0 0
    %144 = vmatpush2.bf16.msra.mxu0 0
    %145 = vmatprep.subr.bf16.mxu0 0
    %146 = vmatpush2.bf16.msra.mxu0 0
    %147 = vmatprep.subr.bf16.mxu0 0
    %148 = vmatpush2.bf16.msra.mxu0 0
    %149 = vmatprep.subr.bf16.mxu0 0
    %150 = vmatpush2.bf16.msra.mxu0 0
    %151 = vmatprep.subr.bf16.mxu0 0
    %152 = vmatpush2.bf16.msra.mxu0 0
    %153 = vmatprep.mubr.bf16.mxu0 0
    %154 = vmatmul.mubr.bf16.gmra.mxu0 %v119
    %v155 = vpop.f32.mrf.mxu0
    %v156 = vadd.f32 %v104, %v155
    %v157 = vpop.f32.mrf.mxu0
    %v158 = vpop.f32.mrf.mxu0
    %v159 = vadd.f32 %v104, %v158
    %v160 = vpop.f32.mrf.mxu0
    %161 = vdwg.mxu0
    %v162 = vpack.c.bf16 %v156, %v156
    %164 = vrot.lane.b32.xlu0 %v162, 96
    %v165 = vpop.permute.xlu0 %164
    %vm166 = vcmask 64512
    %v168 = vsel %vm166, %v162, 0
    %v171 = vsel %vm166, %v165, 0
    %173 = vmatprep.subr.bf16.mxu0 0
    %174 = vmatpush1.bf16.xpose.msra.mxu0 0
    %175 = vmatprep.subr.bf16.mxu0 0
    %176 = vmatpush1.bf16.xpose.msra.mxu0 0
    %177 = vmatprep.subr.bf16.mxu0 0
    %178 = vmatpush1.bf16.xpose.msra.mxu0 0
    %179 = vmatprep.subr.bf16.mxu0 0
    %180 = vmatpush1.bf16.xpose.msra.mxu0 0
    %181 = vmatprep.subr.bf16.mxu0 0
    %182 = vmatpush1.bf16.xpose.msra.mxu0 0
    %183 = vmatprep.subr.bf16.mxu0 0
    %184 = vmatpush1.bf16.xpose.msra.mxu0 0
    %185 = vmatprep.subr.bf16.mxu0 0
    %186 = vmatpush1.bf16.xpose.msra.mxu0 0
    %187 = vmatprep.subr.bf16.mxu0 0
    %188 = vmatpush1.bf16.xpose.msra.mxu0 %v171
    %189 = vmatprep.subr.bf16.mxu0 0
    %190 = vmatpush2.bf16.xpose.msra.mxu0 0
    %191 = vmatprep.subr.bf16.mxu0 0
    %192 = vmatpush2.bf16.xpose.msra.mxu0 0
    %193 = vmatprep.subr.bf16.mxu0 0
    %194 = vmatpush2.bf16.xpose.msra.mxu0 0
    %195 = vmatprep.subr.bf16.mxu0 0
    %196 = vmatpush2.bf16.xpose.msra.mxu0 0
    %197 = vmatprep.subr.bf16.mxu0 0
    %198 = vmatpush2.bf16.xpose.msra.mxu0 0
    %199 = vmatprep.subr.bf16.mxu0 0
    %200 = vmatpush2.bf16.xpose.msra.mxu0 0
    %201 = vmatprep.subr.bf16.mxu0 0
    %202 = vmatpush2.bf16.xpose.msra.mxu0 0
    %203 = vmatprep.subr.bf16.mxu0 0
    %204 = vmatpush2.bf16.xpose.msra.mxu0 0
    %205 = vmatprep.mubr.bf16.mxu0 0
    %206 = vmatmul.mubr.bf16.gmra.mxu0 %v168
    %v207 = vpop.f32.mrf.mxu0
    %v208 = vadd.f32 0.0, %v207
    %v209 = vpop.f32.mrf.mxu0
    %v210 = vpop.f32.mrf.mxu0
    %v211 = vpop.f32.mrf.mxu0
    %212 = vdwg.mxu0
    %v213 = vsel %vm166, %v208, -inf
    %214 = vmax.xlane.f32.xlu0 %v213
    %v215 = vpop.xlane.xlu0 %214
    %v216 = vsub.f32 %v208, %v215
    %v217 = vmul.f32 %v216, 1.442695
    %v218 = vpow.pop %v217
    %v219 = vsel %vm166, %v218, 0.0
    %220 = vadd.xlane.f32.xlu0 %v219
    %v221 = vpop.xlane.xlu0 %220
    %v222 = vrcp.pop %v221
    %v223 = vmul.f32 %v218, %v222
    %v224 = vpack.c.bf16 %v223, %v223
    %225 = vrot.lane.b32.xlu0 %v162, 64
    %v226 = vpop.permute.xlu0 %225
    %v228 = vsel %vm166, %v224, 0
    %vm230 = vcmask 1043456
    %v232 = vsel %vm230, %v226, 0
    %234 = vmatprep.subr.bf16.mxu0 0
    %235 = vmatpush1.bf16.msra.mxu0 0
    %236 = vmatprep.subr.bf16.mxu0 0
    %237 = vmatpush1.bf16.msra.mxu0 0
    %238 = vmatprep.subr.bf16.mxu0 0
    %239 = vmatpush1.bf16.msra.mxu0 0
    %240 = vmatprep.subr.bf16.mxu0 0
    %241 = vmatpush1.bf16.msra.mxu0 0
    %242 = vmatprep.subr.bf16.mxu0 0
    %243 = vmatpush1.bf16.msra.mxu0 0
    %244 = vmatprep.subr.bf16.mxu0 0
    %245 = vmatpush1.bf16.msra.mxu0 0
    %246 = vmatprep.subr.bf16.mxu0 0
    %247 = vmatpush1.bf16.msra.mxu0 0
    %248 = vmatprep.subr.bf16.mxu0 0
    %249 = vmatpush1.bf16.msra.mxu0 %v232
    %250 = vmatprep.subr.bf16.mxu0 0
    %251 = vmatpush2.bf16.msra.mxu0 0
    %252 = vmatprep.subr.bf16.mxu0 0
    %253 = vmatpush2.bf16.msra.mxu0 0
    %254 = vmatprep.subr.bf16.mxu0 0
    %255 = vmatpush2.bf16.msra.mxu0 0
    %256 = vmatprep.subr.bf16.mxu0 0
    %257 = vmatpush2.bf16.msra.mxu0 0
    %258 = vmatprep.subr.bf16.mxu0 0
    %259 = vmatpush2.bf16.msra.mxu0 0
    %260 = vmatprep.subr.bf16.mxu0 0
    %261 = vmatpush2.bf16.msra.mxu0 0
    %262 = vmatprep.subr.bf16.mxu0 0
    %263 = vmatpush2.bf16.msra.mxu0 0
    %264 = vmatprep.subr.bf16.mxu0 0
    %265 = vmatpush2.bf16.msra.mxu0 0
    %266 = vmatprep.mubr.bf16.mxu0 0
    %267 = vmatmul.mubr.bf16.gmra.mxu0 %v228
    %v268 = vpop.f32.mrf.mxu0
    %v269 = vadd.f32 0.0, %v268
    %v270 = vpop.f32.mrf.mxu0
    %v271 = vpop.f32.mrf.mxu0
    %v272 = vpop.f32.mrf.mxu0
    %273 = vdwg.mxu0
    %v274 = vpack.c.bf16 %v159, %v159
    %276 = vrot.lane.b32.xlu0 %v274, 96
    %v277 = vpop.permute.xlu0 %276
    %v279 = vsel %vm166, %v274, 0
    %v282 = vsel %vm166, %v277, 0
    %284 = vmatprep.subr.bf16.mxu0 0
    %285 = vmatpush1.bf16.xpose.msra.mxu0 0
    %286 = vmatprep.subr.bf16.mxu0 0
    %287 = vmatpush1.bf16.xpose.msra.mxu0 0
    %288 = vmatprep.subr.bf16.mxu0 0
    %289 = vmatpush1.bf16.xpose.msra.mxu0 0
    %290 = vmatprep.subr.bf16.mxu0 0
    %291 = vmatpush1.bf16.xpose.msra.mxu0 0
    %292 = vmatprep.subr.bf16.mxu0 0
    %293 = vmatpush1.bf16.xpose.msra.mxu0 0
    %294 = vmatprep.subr.bf16.mxu0 0
    %295 = vmatpush1.bf16.xpose.msra.mxu0 0
    %296 = vmatprep.subr.bf16.mxu0 0
    %297 = vmatpush1.bf16.xpose.msra.mxu0 0
    %298 = vmatprep.subr.bf16.mxu0 0
    %299 = vmatpush1.bf16.xpose.msra.mxu0 %v282
    %300 = vmatprep.subr.bf16.mxu0 0
    %301 = vmatpush2.bf16.xpose.msra.mxu0 0
    %302 = vmatprep.subr.bf16.mxu0 0
    %303 = vmatpush2.bf16.xpose.msra.mxu0 0
    %304 = vmatprep.subr.bf16.mxu0 0
    %305 = vmatpush2.bf16.xpose.msra.mxu0 0
    %306 = vmatprep.subr.bf16.mxu0 0
    %307 = vmatpush2.bf16.xpose.msra.mxu0 0
    %308 = vmatprep.subr.bf16.mxu0 0
    %309 = vmatpush2.bf16.xpose.msra.mxu0 0
    %310 = vmatprep.subr.bf16.mxu0 0
    %311 = vmatpush2.bf16.xpose.msra.mxu0 0
    %312 = vmatprep.subr.bf16.mxu0 0
    %313 = vmatpush2.bf16.xpose.msra.mxu0 0
    %314 = vmatprep.subr.bf16.mxu0 0
    %315 = vmatpush2.bf16.xpose.msra.mxu0 0
    %316 = vmatprep.mubr.bf16.mxu0 0
    %317 = vmatmul.mubr.bf16.gmra.mxu0 %v279
    %v318 = vpop.f32.mrf.mxu0
    %v319 = vadd.f32 0.0, %v318
    %v320 = vpop.f32.mrf.mxu0
    %v321 = vpop.f32.mrf.mxu0
    %v322 = vpop.f32.mrf.mxu0
    %323 = vdwg.mxu0
    %v324 = vsel %vm166, %v319, -inf
    %325 = vmax.xlane.f32.xlu0 %v324
    %v326 = vpop.xlane.xlu0 %325
    %v327 = vsub.f32 %v319, %v326
    %v328 = vmul.f32 %v327, 1.442695
    %v329 = vpow.pop %v328
    %v330 = vsel %vm166, %v329, 0.0
    %331 = vadd.xlane.f32.xlu0 %v330
    %v332 = vpop.xlane.xlu0 %331
    %v333 = vrcp.pop %v332
    %v334 = vmul.f32 %v329, %v333
    %v335 = vpack.c.bf16 %v334, %v334
    %336 = vrot.lane.b32.xlu0 %v274, 64
    %v337 = vpop.permute.xlu0 %336
    %v339 = vsel %vm166, %v335, 0
    %v342 = vsel %vm230, %v337, 0
    %344 = vmatprep.subr.bf16.mxu0 0
    %345 = vmatpush1.bf16.msra.mxu0 0
    %346 = vmatprep.subr.bf16.mxu0 0
    %347 = vmatpush1.bf16.msra.mxu0 0
    %348 = vmatprep.subr.bf16.mxu0 0
    %349 = vmatpush1.bf16.msra.mxu0 0
    %350 = vmatprep.subr.bf16.mxu0 0
    %351 = vmatpush1.bf16.msra.mxu0 0
    %352 = vmatprep.subr.bf16.mxu0 0
    %353 = vmatpush1.bf16.msra.mxu0 0
    %354 = vmatprep.subr.bf16.mxu0 0
    %355 = vmatpush1.bf16.msra.mxu0 0
    %356 = vmatprep.subr.bf16.mxu0 0
    %357 = vmatpush1.bf16.msra.mxu0 0
    %358 = vmatprep.subr.bf16.mxu0 0
    %359 = vmatpush1.bf16.msra.mxu0 %v342
    %360 = vmatprep.subr.bf16.mxu0 0
    %361 = vmatpush2.bf16.msra.mxu0 0
    %362 = vmatprep.subr.bf16.mxu0 0
    %363 = vmatpush2.bf16.msra.mxu0 0
    %364 = vmatprep.subr.bf16.mxu0 0
    %365 = vmatpush2.bf16.msra.mxu0 0
    %366 = vmatprep.subr.bf16.mxu0 0
    %367 = vmatpush2.bf16.msra.mxu0 0
    %368 = vmatprep.subr.bf16.mxu0 0
    %369 = vmatpush2.bf16.msra.mxu0 0
    %370 = vmatprep.subr.bf16.mxu0 0
    %371 = vmatpush2.bf16.msra.mxu0 0
    %372 = vmatprep.subr.bf16.mxu0 0
    %373 = vmatpush2.bf16.msra.mxu0 0
    %374 = vmatprep.subr.bf16.mxu0 0
    %375 = vmatpush2.bf16.msra.mxu0 0
    %376 = vmatprep.mubr.bf16.mxu0 0
    %377 = vmatmul.mubr.bf16.gmra.mxu0 %v339
    %v378 = vpop.f32.mrf.mxu0
    %v379 = vadd.f32 0.0, %v378
    %v380 = vpop.f32.mrf.mxu0
    %v381 = vpop.f32.mrf.mxu0
    %v382 = vpop.f32.mrf.mxu0
    %383 = vdwg.mxu0
    %v384 = vpack.c.bf16 %v379, %v269
    %v385 = vld [vmem:[%s5] sm:$0xf]
    %386 = vrot.lane.b32.xlu0 %v162, 120
    %v387 = vpop.permute.xlu0 %386
    %388 = vrot.lane.b32.xlu0 %v162, 88
    %v389 = vpop.permute.xlu0 %388
    %v391 = vsel %vm166, %v387, 0
    %v394 = vsel %vm166, %v389, 0
    %396 = vmatprep.subr.bf16.mxu0 0
    %397 = vmatpush1.bf16.xpose.msra.mxu0 0
    %398 = vmatprep.subr.bf16.mxu0 0
    %399 = vmatpush1.bf16.xpose.msra.mxu0 0
    %400 = vmatprep.subr.bf16.mxu0 0
    %401 = vmatpush1.bf16.xpose.msra.mxu0 0
    %402 = vmatprep.subr.bf16.mxu0 0
    %403 = vmatpush1.bf16.xpose.msra.mxu0 0
    %404 = vmatprep.subr.bf16.mxu0 0
    %405 = vmatpush1.bf16.xpose.msra.mxu0 0
    %406 = vmatprep.subr.bf16.mxu0 0
    %407 = vmatpush1.bf16.xpose.msra.mxu0 0
    %408 = vmatprep.subr.bf16.mxu0 0
    %409 = vmatpush1.bf16.xpose.msra.mxu0 0
    %410 = vmatprep.subr.bf16.mxu0 0
    %411 = vmatpush1.bf16.xpose.msra.mxu0 %v394
    %412 = vmatprep.subr.bf16.mxu0 0
    %413 = vmatpush2.bf16.xpose.msra.mxu0 0
    %414 = vmatprep.subr.bf16.mxu0 0
    %415 = vmatpush2.bf16.xpose.msra.mxu0 0
    %416 = vmatprep.subr.bf16.mxu0 0
    %417 = vmatpush2.bf16.xpose.msra.mxu0 0
    %418 = vmatprep.subr.bf16.mxu0 0
    %419 = vmatpush2.bf16.xpose.msra.mxu0 0
    %420 = vmatprep.subr.bf16.mxu0 0
    %421 = vmatpush2.bf16.xpose.msra.mxu0 0
    %422 = vmatprep.subr.bf16.mxu0 0
    %423 = vmatpush2.bf16.xpose.msra.mxu0 0
    %424 = vmatprep.subr.bf16.mxu0 0
    %425 = vmatpush2.bf16.xpose.msra.mxu0 0
    %426 = vmatprep.subr.bf16.mxu0 0
    %427 = vmatpush2.bf16.xpose.msra.mxu0 0
    %428 = vmatprep.mubr.bf16.mxu0 0
    %429 = vmatmul.mubr.bf16.gmra.mxu0 %v391
    %v430 = vpop.f32.mrf.mxu0
    %v431 = vadd.f32 0.0, %v430
    %v432 = vpop.f32.mrf.mxu0
    %v433 = vpop.f32.mrf.mxu0
    %v434 = vpop.f32.mrf.mxu0
    %435 = vdwg.mxu0
    %v436 = vsel %vm166, %v431, -inf
    %437 = vmax.xlane.f32.xlu0 %v436
    %v438 = vpop.xlane.xlu0 %437
    %v439 = vsub.f32 %v431, %v438
    %v440 = vmul.f32 %v439, 1.442695
    %v441 = vpow.pop %v440
    %v442 = vsel %vm166, %v441, 0.0
    %443 = vadd.xlane.f32.xlu0 %v442
    %v444 = vpop.xlane.xlu0 %443
    %v445 = vrcp.pop %v444
    %v446 = vmul.f32 %v441, %v445
    %v447 = vpack.c.bf16 %v446, %v446
    %448 = vrot.lane.b32.xlu0 %v162, 56
    %v449 = vpop.permute.xlu0 %448
    %v451 = vsel %vm166, %v447, 0
    %v454 = vsel %vm230, %v449, 0
    %456 = vmatprep.subr.bf16.mxu0 0
    %457 = vmatpush1.bf16.msra.mxu0 0
    %458 = vmatprep.subr.bf16.mxu0 0
    %459 = vmatpush1.bf16.msra.mxu0 0
    %460 = vmatprep.subr.bf16.mxu0 0
    %461 = vmatpush1.bf16.msra.mxu0 0
    %462 = vmatprep.subr.bf16.mxu0 0
    %463 = vmatpush1.bf16.msra.mxu0 0
    %464 = vmatprep.subr.bf16.mxu0 0
    %465 = vmatpush1.bf16.msra.mxu0 0
    %466 = vmatprep.subr.bf16.mxu0 0
    %467 = vmatpush1.bf16.msra.mxu0 0
    %468 = vmatprep.subr.bf16.mxu0 0
    %469 = vmatpush1.bf16.msra.mxu0 0
    %470 = vmatprep.subr.bf16.mxu0 0
    %471 = vmatpush1.bf16.msra.mxu0 %v454
    %472 = vmatprep.subr.bf16.mxu0 0
    %473 = vmatpush2.bf16.msra.mxu0 0
    %474 = vmatprep.subr.bf16.mxu0 0
    %475 = vmatpush2.bf16.msra.mxu0 0
    %476 = vmatprep.subr.bf16.mxu0 0
    %477 = vmatpush2.bf16.msra.mxu0 0
    %478 = vmatprep.subr.bf16.mxu0 0
    %479 = vmatpush2.bf16.msra.mxu0 0
    %480 = vmatprep.subr.bf16.mxu0 0
    %481 = vmatpush2.bf16.msra.mxu0 0
    %482 = vmatprep.subr.bf16.mxu0 0
    %483 = vmatpush2.bf16.msra.mxu0 0
    %484 = vmatprep.subr.bf16.mxu0 0
    %485 = vmatpush2.bf16.msra.mxu0 0
    %486 = vmatprep.subr.bf16.mxu0 0
    %487 = vmatpush2.bf16.msra.mxu0 0
    %488 = vmatprep.mubr.bf16.mxu0 0
    %489 = vmatmul.mubr.bf16.gmra.mxu0 %v451
    %v490 = vpop.f32.mrf.mxu0
    %v491 = vadd.f32 0.0, %v490
    %v492 = vpop.f32.mrf.mxu0
    %v493 = vpop.f32.mrf.mxu0
    %v494 = vpop.f32.mrf.mxu0
    %495 = vdwg.mxu0
    %496 = vrot.lane.b32.xlu0 %v274, 120
    %v497 = vpop.permute.xlu0 %496
    %498 = vrot.lane.b32.xlu0 %v274, 88
    %v499 = vpop.permute.xlu0 %498
    %v501 = vsel %vm166, %v497, 0
    %v504 = vsel %vm166, %v499, 0
    %506 = vmatprep.subr.bf16.mxu0 0
    %507 = vmatpush1.bf16.xpose.msra.mxu0 0
    %508 = vmatprep.subr.bf16.mxu0 0
    %509 = vmatpush1.bf16.xpose.msra.mxu0 0
    %510 = vmatprep.subr.bf16.mxu0 0
    %511 = vmatpush1.bf16.xpose.msra.mxu0 0
    %512 = vmatprep.subr.bf16.mxu0 0
    %513 = vmatpush1.bf16.xpose.msra.mxu0 0
    %514 = vmatprep.subr.bf16.mxu0 0
    %515 = vmatpush1.bf16.xpose.msra.mxu0 0
    %516 = vmatprep.subr.bf16.mxu0 0
    %517 = vmatpush1.bf16.xpose.msra.mxu0 0
    %518 = vmatprep.subr.bf16.mxu0 0
    %519 = vmatpush1.bf16.xpose.msra.mxu0 0
    %520 = vmatprep.subr.bf16.mxu0 0
    %521 = vmatpush1.bf16.xpose.msra.mxu0 %v504
    %522 = vmatprep.subr.bf16.mxu0 0
    %523 = vmatpush2.bf16.xpose.msra.mxu0 0
    %524 = vmatprep.subr.bf16.mxu0 0
    %525 = vmatpush2.bf16.xpose.msra.mxu0 0
    %526 = vmatprep.subr.bf16.mxu0 0
    %527 = vmatpush2.bf16.xpose.msra.mxu0 0
    %528 = vmatprep.subr.bf16.mxu0 0
    %529 = vmatpush2.bf16.xpose.msra.mxu0 0
    %530 = vmatprep.subr.bf16.mxu0 0
    %531 = vmatpush2.bf16.xpose.msra.mxu0 0
    %532 = vmatprep.subr.bf16.mxu0 0
    %533 = vmatpush2.bf16.xpose.msra.mxu0 0
    %534 = vmatprep.subr.bf16.mxu0 0
    %535 = vmatpush2.bf16.xpose.msra.mxu0 0
    %536 = vmatprep.subr.bf16.mxu0 0
    %537 = vmatpush2.bf16.xpose.msra.mxu0 0
    %538 = vmatprep.mubr.bf16.mxu0 0
    %539 = vmatmul.mubr.bf16.gmra.mxu0 %v501
    %v540 = vpop.f32.mrf.mxu0
    %v541 = vadd.f32 0.0, %v540
    %v542 = vpop.f32.mrf.mxu0
    %v543 = vpop.f32.mrf.mxu0
    %v544 = vpop.f32.mrf.mxu0
    %545 = vdwg.mxu0
    %v546 = vsel %vm166, %v541, -inf
    %547 = vmax.xlane.f32.xlu0 %v546
    %v548 = vpop.xlane.xlu0 %547
    %v549 = vsub.f32 %v541, %v548
    %v550 = vmul.f32 %v549, 1.442695
    %v551 = vpow.pop %v550
    %v552 = vsel %vm166, %v551, 0.0
    %553 = vadd.xlane.f32.xlu0 %v552
    %v554 = vpop.xlane.xlu0 %553
    %v555 = vrcp.pop %v554
    %v556 = vmul.f32 %v551, %v555
    %v557 = vpack.c.bf16 %v556, %v556
    %558 = vrot.lane.b32.xlu0 %v274, 56
    %v559 = vpop.permute.xlu0 %558
    %v561 = vsel %vm166, %v557, 0
    %v564 = vsel %vm230, %v559, 0
    %566 = vmatprep.subr.bf16.mxu0 0
    %567 = vmatpush1.bf16.msra.mxu0 0
    %568 = vmatprep.subr.bf16.mxu0 0
    %569 = vmatpush1.bf16.msra.mxu0 0
    %570 = vmatprep.subr.bf16.mxu0 0
    %571 = vmatpush1.bf16.msra.mxu0 0
    %572 = vmatprep.subr.bf16.mxu0 0
    %573 = vmatpush1.bf16.msra.mxu0 0
    %574 = vmatprep.subr.bf16.mxu0 0
    %575 = vmatpush1.bf16.msra.mxu0 0
    %576 = vmatprep.subr.bf16.mxu0 0
    %577 = vmatpush1.bf16.msra.mxu0 0
    %578 = vmatprep.subr.bf16.mxu0 0
    %579 = vmatpush1.bf16.msra.mxu0 0
    %580 = vmatprep.subr.bf16.mxu0 0
    %581 = vmatpush1.bf16.msra.mxu0 %v564
    %582 = vmatprep.subr.bf16.mxu0 0
    %583 = vmatpush2.bf16.msra.mxu0 0
    %584 = vmatprep.subr.bf16.mxu0 0
    %585 = vmatpush2.bf16.msra.mxu0 0
    %586 = vmatprep.subr.bf16.mxu0 0
    %587 = vmatpush2.bf16.msra.mxu0 0
    %588 = vmatprep.subr.bf16.mxu0 0
    %589 = vmatpush2.bf16.msra.mxu0 0
    %590 = vmatprep.subr.bf16.mxu0 0
    %591 = vmatpush2.bf16.msra.mxu0 0
    %592 = vmatprep.subr.bf16.mxu0 0
    %593 = vmatpush2.bf16.msra.mxu0 0
    %594 = vmatprep.subr.bf16.mxu0 0
    %595 = vmatpush2.bf16.msra.mxu0 0
    %596 = vmatprep.subr.bf16.mxu0 0
    %597 = vmatpush2.bf16.msra.mxu0 0
    %598 = vmatprep.mubr.bf16.mxu0 0
    %599 = vmatmul.mubr.bf16.gmra.mxu0 %v561
    %v600 = vpop.f32.mrf.mxu0
    %v601 = vadd.f32 0.0, %v600
    %v602 = vpop.f32.mrf.mxu0
    %v603 = vpop.f32.mrf.mxu0
    %v604 = vpop.f32.mrf.mxu0
    %605 = vdwg.mxu0
    %v606 = vpack.c.bf16 %v601, %v491
    %v607 = vld [vmem:[%s5 + $0x4] sm:$0xf]
    %v609 = vsel %vm166, %v606, 0
    %v612 = vsel %vm230, %v607, 0
    %614 = vmatprep.subr.bf16.mxu0 0
    %615 = vmatpush1.bf16.msra.mxu0 0
    %616 = vmatprep.subr.bf16.mxu0 0
    %617 = vmatpush1.bf16.msra.mxu0 0
    %618 = vmatprep.subr.bf16.mxu0 0
    %619 = vmatpush1.bf16.msra.mxu0 0
    %620 = vmatprep.subr.bf16.mxu0 0
    %621 = vmatpush1.bf16.msra.mxu0 0
    %622 = vmatprep.subr.bf16.mxu0 0
    %623 = vmatpush1.bf16.msra.mxu0 0
    %624 = vmatprep.subr.bf16.mxu0 0
    %625 = vmatpush1.bf16.msra.mxu0 0
    %626 = vmatprep.subr.bf16.mxu0 0
    %627 = vmatpush1.bf16.msra.mxu0 0
    %628 = vmatprep.subr.bf16.mxu0 0
    %629 = vmatpush1.bf16.msra.mxu0 %v612
    %630 = vmatprep.subr.bf16.mxu0 0
    %631 = vmatpush2.bf16.msra.mxu0 0
    %632 = vmatprep.subr.bf16.mxu0 0
    %633 = vmatpush2.bf16.msra.mxu0 0
    %634 = vmatprep.subr.bf16.mxu0 0
    %635 = vmatpush2.bf16.msra.mxu0 0
    %636 = vmatprep.subr.bf16.mxu0 0
    %637 = vmatpush2.bf16.msra.mxu0 0
    %638 = vmatprep.subr.bf16.mxu0 0
    %639 = vmatpush2.bf16.msra.mxu0 0
    %640 = vmatprep.subr.bf16.mxu0 0
    %641 = vmatpush2.bf16.msra.mxu0 0
    %642 = vmatprep.subr.bf16.mxu0 0
    %643 = vmatpush2.bf16.msra.mxu0 0
    %644 = vmatprep.subr.bf16.mxu0 0
    %645 = vmatpush2.bf16.msra.mxu0 0
    %646 = vmatprep.mubr.bf16.mxu0 0
    %647 = vmatmul.mubr.bf16.gmra.mxu0 %v609
    %v648 = vpop.f32.mrf.mxu0
    %v649 = vadd.f32 0.0, %v648
    %v650 = vpop.f32.mrf.mxu0
    %v651 = vpop.f32.mrf.mxu0
    %v652 = vadd.f32 0.0, %v651
    %v653 = vpop.f32.mrf.mxu0
    %654 = vdwg.mxu0
    %v656 = vsel %vm166, %v384, 0
    %v659 = vsel %vm230, %v385, 0
    %661 = vmatprep.subr.bf16.mxu0 0
    %662 = vmatpush1.bf16.msra.mxu0 0
    %663 = vmatprep.subr.bf16.mxu0 0
    %664 = vmatpush1.bf16.msra.mxu0 0
    %665 = vmatprep.subr.bf16.mxu0 0
    %666 = vmatpush1.bf16.msra.mxu0 0
    %667 = vmatprep.subr.bf16.mxu0 0
    %668 = vmatpush1.bf16.msra.mxu0 0
    %669 = vmatprep.subr.bf16.mxu0 0
    %670 = vmatpush1.bf16.msra.mxu0 0
    %671 = vmatprep.subr.bf16.mxu0 0
    %672 = vmatpush1.bf16.msra.mxu0 0
    %673 = vmatprep.subr.bf16.mxu0 0
    %674 = vmatpush1.bf16.msra.mxu0 0
    %675 = vmatprep.subr.bf16.mxu0 0
    %676 = vmatpush1.bf16.msra.mxu0 %v659
    %677 = vmatprep.subr.bf16.mxu0 0
    %678 = vmatpush2.bf16.msra.mxu0 0
    %679 = vmatprep.subr.bf16.mxu0 0
    %680 = vmatpush2.bf16.msra.mxu0 0
    %681 = vmatprep.subr.bf16.mxu0 0
    %682 = vmatpush2.bf16.msra.mxu0 0
    %683 = vmatprep.subr.bf16.mxu0 0
    %684 = vmatpush2.bf16.msra.mxu0 0
    %685 = vmatprep.subr.bf16.mxu0 0
    %686 = vmatpush2.bf16.msra.mxu0 0
    %687 = vmatprep.subr.bf16.mxu0 0
    %688 = vmatpush2.bf16.msra.mxu0 0
    %689 = vmatprep.subr.bf16.mxu0 0
    %690 = vmatpush2.bf16.msra.mxu0 0
    %691 = vmatprep.subr.bf16.mxu0 0
    %692 = vmatpush2.bf16.msra.mxu0 0
    %693 = vmatprep.mubr.bf16.mxu0 0
    %694 = vmatmul.mubr.bf16.gmra.mxu0 %v656
    %v695 = vpop.f32.mrf.mxu0
    %v696 = vadd.f32 %v649, %v695
    %v697 = vpop.f32.mrf.mxu0
    %v698 = vpop.f32.mrf.mxu0
    %v699 = vadd.f32 %v652, %v698
    %v700 = vpop.f32.mrf.mxu0
    %701 = vdwg.mxu0
    %702 = vrot.lane.b32.xlu0 %v162, 112
    %v703 = vpop.permute.xlu0 %702
    %704 = vrot.lane.b32.xlu0 %v162, 80
    %v705 = vpop.permute.xlu0 %704
    %v707 = vsel %vm166, %v703, 0
    %v710 = vsel %vm166, %v705, 0
    %712 = vmatprep.subr.bf16.mxu0 0
    %713 = vmatpush1.bf16.xpose.msra.mxu0 0
    %714 = vmatprep.subr.bf16.mxu0 0
    %715 = vmatpush1.bf16.xpose.msra.mxu0 0
    %716 = vmatprep.subr.bf16.mxu0 0
    %717 = vmatpush1.bf16.xpose.msra.mxu0 0
    %718 = vmatprep.subr.bf16.mxu0 0
    %719 = vmatpush1.bf16.xpose.msra.mxu0 0
    %720 = vmatprep.subr.bf16.mxu0 0
    %721 = vmatpush1.bf16.xpose.msra.mxu0 0
    %722 = vmatprep.subr.bf16.mxu0 0
    %723 = vmatpush1.bf16.xpose.msra.mxu0 0
    %724 = vmatprep.subr.bf16.mxu0 0
    %725 = vmatpush1.bf16.xpose.msra.mxu0 0
    %726 = vmatprep.subr.bf16.mxu0 0
    %727 = vmatpush1.bf16.xpose.msra.mxu0 %v710
    %728 = vmatprep.subr.bf16.mxu0 0
    %729 = vmatpush2.bf16.xpose.msra.mxu0 0
    %730 = vmatprep.subr.bf16.mxu0 0
    %731 = vmatpush2.bf16.xpose.msra.mxu0 0
    %732 = vmatprep.subr.bf16.mxu0 0
    %733 = vmatpush2.bf16.xpose.msra.mxu0 0
    %734 = vmatprep.subr.bf16.mxu0 0
    %735 = vmatpush2.bf16.xpose.msra.mxu0 0
    %736 = vmatprep.subr.bf16.mxu0 0
    %737 = vmatpush2.bf16.xpose.msra.mxu0 0
    %738 = vmatprep.subr.bf16.mxu0 0
    %739 = vmatpush2.bf16.xpose.msra.mxu0 0
    %740 = vmatprep.subr.bf16.mxu0 0
    %741 = vmatpush2.bf16.xpose.msra.mxu0 0
    %742 = vmatprep.subr.bf16.mxu0 0
    %743 = vmatpush2.bf16.xpose.msra.mxu0 0
    %744 = vmatprep.mubr.bf16.mxu0 0
    %745 = vmatmul.mubr.bf16.gmra.mxu0 %v707
    %v746 = vpop.f32.mrf.mxu0
    %v747 = vadd.f32 0.0, %v746
    %v748 = vpop.f32.mrf.mxu0
    %v749 = vpop.f32.mrf.mxu0
    %v750 = vpop.f32.mrf.mxu0
    %751 = vdwg.mxu0
    %v752 = vsel %vm166, %v747, -inf
    %753 = vmax.xlane.f32.xlu0 %v752
    %v754 = vpop.xlane.xlu0 %753
    %v755 = vsub.f32 %v747, %v754
    %v756 = vmul.f32 %v755, 1.442695
    %v757 = vpow.pop %v756
    %v758 = vsel %vm166, %v757, 0.0
    %759 = vadd.xlane.f32.xlu0 %v758
    %v760 = vpop.xlane.xlu0 %759
    %v761 = vrcp.pop %v760
    %v762 = vmul.f32 %v757, %v761
    %v763 = vpack.c.bf16 %v762, %v762
    %764 = vrot.lane.b32.xlu0 %v162, 48
    %v765 = vpop.permute.xlu0 %764
    %v767 = vsel %vm166, %v763, 0
    %v770 = vsel %vm230, %v765, 0
    %772 = vmatprep.subr.bf16.mxu0 0
    %773 = vmatpush1.bf16.msra.mxu0 0
    %774 = vmatprep.subr.bf16.mxu0 0
    %775 = vmatpush1.bf16.msra.mxu0 0
    %776 = vmatprep.subr.bf16.mxu0 0
    %777 = vmatpush1.bf16.msra.mxu0 0
    %778 = vmatprep.subr.bf16.mxu0 0
    %779 = vmatpush1.bf16.msra.mxu0 0
    %780 = vmatprep.subr.bf16.mxu0 0
    %781 = vmatpush1.bf16.msra.mxu0 0
    %782 = vmatprep.subr.bf16.mxu0 0
    %783 = vmatpush1.bf16.msra.mxu0 0
    %784 = vmatprep.subr.bf16.mxu0 0
    %785 = vmatpush1.bf16.msra.mxu0 0
    %786 = vmatprep.subr.bf16.mxu0 0
    %787 = vmatpush1.bf16.msra.mxu0 %v770
    %788 = vmatprep.subr.bf16.mxu0 0
    %789 = vmatpush2.bf16.msra.mxu0 0
    %790 = vmatprep.subr.bf16.mxu0 0
    %791 = vmatpush2.bf16.msra.mxu0 0
    %792 = vmatprep.subr.bf16.mxu0 0
    %793 = vmatpush2.bf16.msra.mxu0 0
    %794 = vmatprep.subr.bf16.mxu0 0
    %795 = vmatpush2.bf16.msra.mxu0 0
    %796 = vmatprep.subr.bf16.mxu0 0
    %797 = vmatpush2.bf16.msra.mxu0 0
    %798 = vmatprep.subr.bf16.mxu0 0
    %799 = vmatpush2.bf16.msra.mxu0 0
    %800 = vmatprep.subr.bf16.mxu0 0
    %801 = vmatpush2.bf16.msra.mxu0 0
    %802 = vmatprep.subr.bf16.mxu0 0
    %803 = vmatpush2.bf16.msra.mxu0 0
    %804 = vmatprep.mubr.bf16.mxu0 0
    %805 = vmatmul.mubr.bf16.gmra.mxu0 %v767
    %v806 = vpop.f32.mrf.mxu0
    %v807 = vadd.f32 0.0, %v806
    %v808 = vpop.f32.mrf.mxu0
    %v809 = vpop.f32.mrf.mxu0
    %v810 = vpop.f32.mrf.mxu0
    %811 = vdwg.mxu0
    %812 = vrot.lane.b32.xlu0 %v274, 112
    %v813 = vpop.permute.xlu0 %812
    %814 = vrot.lane.b32.xlu0 %v274, 80
    %v815 = vpop.permute.xlu0 %814
    %v817 = vsel %vm166, %v813, 0
    %v820 = vsel %vm166, %v815, 0
    %822 = vmatprep.subr.bf16.mxu0 0
    %823 = vmatpush1.bf16.xpose.msra.mxu0 0
    %824 = vmatprep.subr.bf16.mxu0 0
    %825 = vmatpush1.bf16.xpose.msra.mxu0 0
    %826 = vmatprep.subr.bf16.mxu0 0
    %827 = vmatpush1.bf16.xpose.msra.mxu0 0
    %828 = vmatprep.subr.bf16.mxu0 0
    %829 = vmatpush1.bf16.xpose.msra.mxu0 0
    %830 = vmatprep.subr.bf16.mxu0 0
    %831 = vmatpush1.bf16.xpose.msra.mxu0 0
    %832 = vmatprep.subr.bf16.mxu0 0
    %833 = vmatpush1.bf16.xpose.msra.mxu0 0
    %834 = vmatprep.subr.bf16.mxu0 0
    %835 = vmatpush1.bf16.xpose.msra.mxu0 0
    %836 = vmatprep.subr.bf16.mxu0 0
    %837 = vmatpush1.bf16.xpose.msra.mxu0 %v820
    %838 = vmatprep.subr.bf16.mxu0 0
    %839 = vmatpush2.bf16.xpose.msra.mxu0 0
    %840 = vmatprep.subr.bf16.mxu0 0
    %841 = vmatpush2.bf16.xpose.msra.mxu0 0
    %842 = vmatprep.subr.bf16.mxu0 0
    %843 = vmatpush2.bf16.xpose.msra.mxu0 0
    %844 = vmatprep.subr.bf16.mxu0 0
    %845 = vmatpush2.bf16.xpose.msra.mxu0 0
    %846 = vmatprep.subr.bf16.mxu0 0
    %847 = vmatpush2.bf16.xpose.msra.mxu0 0
    %848 = vmatprep.subr.bf16.mxu0 0
    %849 = vmatpush2.bf16.xpose.msra.mxu0 0
    %850 = vmatprep.subr.bf16.mxu0 0
    %851 = vmatpush2.bf16.xpose.msra.mxu0 0
    %852 = vmatprep.subr.bf16.mxu0 0
    %853 = vmatpush2.bf16.xpose.msra.mxu0 0
    %854 = vmatprep.mubr.bf16.mxu0 0
    %855 = vmatmul.mubr.bf16.gmra.mxu0 %v817
    %v856 = vpop.f32.mrf.mxu0
    %v857 = vadd.f32 0.0, %v856
    %v858 = vpop.f32.mrf.mxu0
    %v859 = vpop.f32.mrf.mxu0
    %v860 = vpop.f32.mrf.mxu0
    %861 = vdwg.mxu0
    %v862 = vsel %vm166, %v857, -inf
    %863 = vmax.xlane.f32.xlu0 %v862
    %v864 = vpop.xlane.xlu0 %863
    %v865 = vsub.f32 %v857, %v864
    %v866 = vmul.f32 %v865, 1.442695
    %v867 = vpow.pop %v866
    %v868 = vsel %vm166, %v867, 0.0
    %869 = vadd.xlane.f32.xlu0 %v868
    %v870 = vpop.xlane.xlu0 %869
    %v871 = vrcp.pop %v870
    %v872 = vmul.f32 %v867, %v871
    %v873 = vpack.c.bf16 %v872, %v872
    %874 = vrot.lane.b32.xlu0 %v274, 48
    %v875 = vpop.permute.xlu0 %874
    %v877 = vsel %vm166, %v873, 0
    %v880 = vsel %vm230, %v875, 0
    %882 = vmatprep.subr.bf16.mxu0 0
    %883 = vmatpush1.bf16.msra.mxu0 0
    %884 = vmatprep.subr.bf16.mxu0 0
    %885 = vmatpush1.bf16.msra.mxu0 0
    %886 = vmatprep.subr.bf16.mxu0 0
    %887 = vmatpush1.bf16.msra.mxu0 0
    %888 = vmatprep.subr.bf16.mxu0 0
    %889 = vmatpush1.bf16.msra.mxu0 0
    %890 = vmatprep.subr.bf16.mxu0 0
    %891 = vmatpush1.bf16.msra.mxu0 0
    %892 = vmatprep.subr.bf16.mxu0 0
    %893 = vmatpush1.bf16.msra.mxu0 0
    %894 = vmatprep.subr.bf16.mxu0 0
    %895 = vmatpush1.bf16.msra.mxu0 0
    %896 = vmatprep.subr.bf16.mxu0 0
    %897 = vmatpush1.bf16.msra.mxu0 %v880
    %898 = vmatprep.subr.bf16.mxu0 0
    %899 = vmatpush2.bf16.msra.mxu0 0
    %900 = vmatprep.subr.bf16.mxu0 0
    %901 = vmatpush2.bf16.msra.mxu0 0
    %902 = vmatprep.subr.bf16.mxu0 0
    %903 = vmatpush2.bf16.msra.mxu0 0
    %904 = vmatprep.subr.bf16.mxu0 0
    %905 = vmatpush2.bf16.msra.mxu0 0
    %906 = vmatprep.subr.bf16.mxu0 0
    %907 = vmatpush2.bf16.msra.mxu0 0
    %908 = vmatprep.subr.bf16.mxu0 0
    %909 = vmatpush2.bf16.msra.mxu0 0
    %910 = vmatprep.subr.bf16.mxu0 0
    %911 = vmatpush2.bf16.msra.mxu0 0
    %912 = vmatprep.subr.bf16.mxu0 0
    %913 = vmatpush2.bf16.msra.mxu0 0
    %914 = vmatprep.mubr.bf16.mxu0 0
    %915 = vmatmul.mubr.bf16.gmra.mxu0 %v877
    %v916 = vpop.f32.mrf.mxu0
    %v917 = vadd.f32 0.0, %v916
    %v918 = vpop.f32.mrf.mxu0
    %v919 = vpop.f32.mrf.mxu0
    %v920 = vpop.f32.mrf.mxu0
    %921 = vdwg.mxu0
    %v922 = vpack.c.bf16 %v917, %v807
    %v923 = vld [vmem:[%s5 + $0x8] sm:$0xf]
    %v925 = vsel %vm166, %v922, 0
    %v928 = vsel %vm230, %v923, 0
    %930 = vmatprep.subr.bf16.mxu0 0
    %931 = vmatpush1.bf16.msra.mxu0 0
    %932 = vmatprep.subr.bf16.mxu0 0
    %933 = vmatpush1.bf16.msra.mxu0 0
    %934 = vmatprep.subr.bf16.mxu0 0
    %935 = vmatpush1.bf16.msra.mxu0 0
    %936 = vmatprep.subr.bf16.mxu0 0
    %937 = vmatpush1.bf16.msra.mxu0 0
    %938 = vmatprep.subr.bf16.mxu0 0
    %939 = vmatpush1.bf16.msra.mxu0 0
    %940 = vmatprep.subr.bf16.mxu0 0
    %941 = vmatpush1.bf16.msra.mxu0 0
    %942 = vmatprep.subr.bf16.mxu0 0
    %943 = vmatpush1.bf16.msra.mxu0 0
    %944 = vmatprep.subr.bf16.mxu0 0
    %945 = vmatpush1.bf16.msra.mxu0 %v928
    %946 = vmatprep.subr.bf16.mxu0 0
    %947 = vmatpush2.bf16.msra.mxu0 0
    %948 = vmatprep.subr.bf16.mxu0 0
    %949 = vmatpush2.bf16.msra.mxu0 0
    %950 = vmatprep.subr.bf16.mxu0 0
    %951 = vmatpush2.bf16.msra.mxu0 0
    %952 = vmatprep.subr.bf16.mxu0 0
    %953 = vmatpush2.bf16.msra.mxu0 0
    %954 = vmatprep.subr.bf16.mxu0 0
    %955 = vmatpush2.bf16.msra.mxu0 0
    %956 = vmatprep.subr.bf16.mxu0 0
    %957 = vmatpush2.bf16.msra.mxu0 0
    %958 = vmatprep.subr.bf16.mxu0 0
    %959 = vmatpush2.bf16.msra.mxu0 0
    %960 = vmatprep.subr.bf16.mxu0 0
    %961 = vmatpush2.bf16.msra.mxu0 0
    %962 = vmatprep.mubr.bf16.mxu0 0
    %963 = vmatmul.mubr.bf16.gmra.mxu0 %v925
    %v964 = vpop.f32.mrf.mxu0
    %v965 = vadd.f32 0.0, %v964
    %v966 = vpop.f32.mrf.mxu0
    %v967 = vpop.f32.mrf.mxu0
    %v968 = vadd.f32 0.0, %v967
    %v969 = vpop.f32.mrf.mxu0
    %970 = vdwg.mxu0
    %v971 = vadd.f32 %v696, %v965
    %v972 = vadd.f32 %v699, %v968
    %973 = vrot.lane.b32.xlu0 %v162, 104
    %v974 = vpop.permute.xlu0 %973
    %975 = vrot.lane.b32.xlu0 %v162, 72
    %v976 = vpop.permute.xlu0 %975
    %v978 = vsel %vm166, %v974, 0
    %v981 = vsel %vm166, %v976, 0
    %983 = vmatprep.subr.bf16.mxu0 0
    %984 = vmatpush1.bf16.xpose.msra.mxu0 0
    %985 = vmatprep.subr.bf16.mxu0 0
    %986 = vmatpush1.bf16.xpose.msra.mxu0 0
    %987 = vmatprep.subr.bf16.mxu0 0
    %988 = vmatpush1.bf16.xpose.msra.mxu0 0
    %989 = vmatprep.subr.bf16.mxu0 0
    %990 = vmatpush1.bf16.xpose.msra.mxu0 0
    %991 = vmatprep.subr.bf16.mxu0 0
    %992 = vmatpush1.bf16.xpose.msra.mxu0 0
    %993 = vmatprep.subr.bf16.mxu0 0
    %994 = vmatpush1.bf16.xpose.msra.mxu0 0
    %995 = vmatprep.subr.bf16.mxu0 0
    %996 = vmatpush1.bf16.xpose.msra.mxu0 0
    %997 = vmatprep.subr.bf16.mxu0 0
    %998 = vmatpush1.bf16.xpose.msra.mxu0 %v981
    %999 = vmatprep.subr.bf16.mxu0 0
    %1000 = vmatpush2.bf16.xpose.msra.mxu0 0
    %1001 = vmatprep.subr.bf16.mxu0 0
    %1002 = vmatpush2.bf16.xpose.msra.mxu0 0
    %1003 = vmatprep.subr.bf16.mxu0 0
    %1004 = vmatpush2.bf16.xpose.msra.mxu0 0
    %1005 = vmatprep.subr.bf16.mxu0 0
    %1006 = vmatpush2.bf16.xpose.msra.mxu0 0
    %1007 = vmatprep.subr.bf16.mxu0 0
    %1008 = vmatpush2.bf16.xpose.msra.mxu0 0
    %1009 = vmatprep.subr.bf16.mxu0 0
    %1010 = vmatpush2.bf16.xpose.msra.mxu0 0
    %1011 = vmatprep.subr.bf16.mxu0 0
    %1012 = vmatpush2.bf16.xpose.msra.mxu0 0
    %1013 = vmatprep.subr.bf16.mxu0 0
    %1014 = vmatpush2.bf16.xpose.msra.mxu0 0
    %1015 = vmatprep.mubr.bf16.mxu0 0
    %1016 = vmatmul.mubr.bf16.gmra.mxu0 %v978
    %v1017 = vpop.f32.mrf.mxu0
    %v1018 = vadd.f32 0.0, %v1017
    %v1019 = vpop.f32.mrf.mxu0
    %v1020 = vpop.f32.mrf.mxu0
    %v1021 = vpop.f32.mrf.mxu0
    %1022 = vdwg.mxu0
    %v1023 = vsel %vm166, %v1018, -inf
    %1024 = vmax.xlane.f32.xlu0 %v1023
    %v1025 = vpop.xlane.xlu0 %1024
    %v1026 = vsub.f32 %v1018, %v1025
    %v1027 = vmul.f32 %v1026, 1.442695
    %v1028 = vpow.pop %v1027
    %v1029 = vsel %vm166, %v1028, 0.0
    %1030 = vadd.xlane.f32.xlu0 %v1029
    %v1031 = vpop.xlane.xlu0 %1030
    %v1032 = vrcp.pop %v1031
    %v1033 = vmul.f32 %v1028, %v1032
    %v1034 = vpack.c.bf16 %v1033, %v1033
    %1035 = vrot.lane.b32.xlu0 %v162, 40
    %v1036 = vpop.permute.xlu0 %1035
    %v1038 = vsel %vm166, %v1034, 0
    %v1041 = vsel %vm230, %v1036, 0
    %1043 = vmatprep.subr.bf16.mxu0 0
    %1044 = vmatpush1.bf16.msra.mxu0 0
    %1045 = vmatprep.subr.bf16.mxu0 0
    %1046 = vmatpush1.bf16.msra.mxu0 0
    %1047 = vmatprep.subr.bf16.mxu0 0
    %1048 = vmatpush1.bf16.msra.mxu0 0
    %1049 = vmatprep.subr.bf16.mxu0 0
    %1050 = vmatpush1.bf16.msra.mxu0 0
    %1051 = vmatprep.subr.bf16.mxu0 0
    %1052 = vmatpush1.bf16.msra.mxu0 0
    %1053 = vmatprep.subr.bf16.mxu0 0
    %1054 = vmatpush1.bf16.msra.mxu0 0
    %1055 = vmatprep.subr.bf16.mxu0 0
    %1056 = vmatpush1.bf16.msra.mxu0 0
    %1057 = vmatprep.subr.bf16.mxu0 0
    %1058 = vmatpush1.bf16.msra.mxu0 %v1041
    %1059 = vmatprep.subr.bf16.mxu0 0
    %1060 = vmatpush2.bf16.msra.mxu0 0
    %1061 = vmatprep.subr.bf16.mxu0 0
    %1062 = vmatpush2.bf16.msra.mxu0 0
    %1063 = vmatprep.subr.bf16.mxu0 0
    %1064 = vmatpush2.bf16.msra.mxu0 0
    %1065 = vmatprep.subr.bf16.mxu0 0
    %1066 = vmatpush2.bf16.msra.mxu0 0
    %1067 = vmatprep.subr.bf16.mxu0 0
    %1068 = vmatpush2.bf16.msra.mxu0 0
    %1069 = vmatprep.subr.bf16.mxu0 0
    %1070 = vmatpush2.bf16.msra.mxu0 0
    %1071 = vmatprep.subr.bf16.mxu0 0
    %1072 = vmatpush2.bf16.msra.mxu0 0
    %1073 = vmatprep.subr.bf16.mxu0 0
    %1074 = vmatpush2.bf16.msra.mxu0 0
    %1075 = vmatprep.mubr.bf16.mxu0 0
    %1076 = vmatmul.mubr.bf16.gmra.mxu0 %v1038
    %v1077 = vpop.f32.mrf.mxu0
    %v1078 = vadd.f32 0.0, %v1077
    %v1079 = vpop.f32.mrf.mxu0
    %v1080 = vpop.f32.mrf.mxu0
    %v1081 = vpop.f32.mrf.mxu0
    %1082 = vdwg.mxu0
    %1083 = vrot.lane.b32.xlu0 %v274, 104
    %v1084 = vpop.permute.xlu0 %1083
    %1085 = vrot.lane.b32.xlu0 %v274, 72
    %v1086 = vpop.permute.xlu0 %1085
    %v1088 = vsel %vm166, %v1084, 0
    %v1091 = vsel %vm166, %v1086, 0
    %1093 = vmatprep.subr.bf16.mxu0 0
    %1094 = vmatpush1.bf16.xpose.msra.mxu0 0
    %1095 = vmatprep.subr.bf16.mxu0 0
    %1096 = vmatpush1.bf16.xpose.msra.mxu0 0
    %1097 = vmatprep.subr.bf16.mxu0 0
    %1098 = vmatpush1.bf16.xpose.msra.mxu0 0
    %1099 = vmatprep.subr.bf16.mxu0 0
    %1100 = vmatpush1.bf16.xpose.msra.mxu0 0
    %1101 = vmatprep.subr.bf16.mxu0 0
    %1102 = vmatpush1.bf16.xpose.msra.mxu0 0
    %1103 = vmatprep.subr.bf16.mxu0 0
    %1104 = vmatpush1.bf16.xpose.msra.mxu0 0
    %1105 = vmatprep.subr.bf16.mxu0 0
    %1106 = vmatpush1.bf16.xpose.msra.mxu0 0
    %1107 = vmatprep.subr.bf16.mxu0 0
    %1108 = vmatpush1.bf16.xpose.msra.mxu0 %v1091
    %1109 = vmatprep.subr.bf16.mxu0 0
    %1110 = vmatpush2.bf16.xpose.msra.mxu0 0
    %1111 = vmatprep.subr.bf16.mxu0 0
    %1112 = vmatpush2.bf16.xpose.msra.mxu0 0
    %1113 = vmatprep.subr.bf16.mxu0 0
    %1114 = vmatpush2.bf16.xpose.msra.mxu0 0
    %1115 = vmatprep.subr.bf16.mxu0 0
    %1116 = vmatpush2.bf16.xpose.msra.mxu0 0
    %1117 = vmatprep.subr.bf16.mxu0 0
    %1118 = vmatpush2.bf16.xpose.msra.mxu0 0
    %1119 = vmatprep.subr.bf16.mxu0 0
    %1120 = vmatpush2.bf16.xpose.msra.mxu0 0
    %1121 = vmatprep.subr.bf16.mxu0 0
    %1122 = vmatpush2.bf16.xpose.msra.mxu0 0
    %1123 = vmatprep.subr.bf16.mxu0 0
    %1124 = vmatpush2.bf16.xpose.msra.mxu0 0
    %1125 = vmatprep.mubr.bf16.mxu0 0
    %1126 = vmatmul.mubr.bf16.gmra.mxu0 %v1088
    %v1127 = vpop.f32.mrf.mxu0
    %v1128 = vadd.f32 0.0, %v1127
    %v1129 = vpop.f32.mrf.mxu0
    %v1130 = vpop.f32.mrf.mxu0
    %v1131 = vpop.f32.mrf.mxu0
    %1132 = vdwg.mxu0
    %v1133 = vsel %vm166, %v1128, -inf
    %1134 = vmax.xlane.f32.xlu0 %v1133
    %v1135 = vpop.xlane.xlu0 %1134
    %v1136 = vsub.f32 %v1128, %v1135
    %v1137 = vmul.f32 %v1136, 1.442695
    %v1138 = vpow.pop %v1137
    %v1139 = vsel %vm166, %v1138, 0.0
    %1140 = vadd.xlane.f32.xlu0 %v1139
    %v1141 = vpop.xlane.xlu0 %1140
    %v1142 = vrcp.pop %v1141
    %v1143 = vmul.f32 %v1138, %v1142
    %v1144 = vpack.c.bf16 %v1143, %v1143
    %1145 = vrot.lane.b32.xlu0 %v274, 40
    %v1146 = vpop.permute.xlu0 %1145
    %v1148 = vsel %vm166, %v1144, 0
    %v1151 = vsel %vm230, %v1146, 0
    %1153 = vmatprep.subr.bf16.mxu0 0
    %1154 = vmatpush1.bf16.msra.mxu0 0
    %1155 = vmatprep.subr.bf16.mxu0 0
    %1156 = vmatpush1.bf16.msra.mxu0 0
    %1157 = vmatprep.subr.bf16.mxu0 0
    %1158 = vmatpush1.bf16.msra.mxu0 0
    %1159 = vmatprep.subr.bf16.mxu0 0
    %1160 = vmatpush1.bf16.msra.mxu0 0
    %1161 = vmatprep.subr.bf16.mxu0 0
    %1162 = vmatpush1.bf16.msra.mxu0 0
    %1163 = vmatprep.subr.bf16.mxu0 0
    %1164 = vmatpush1.bf16.msra.mxu0 0
    %1165 = vmatprep.subr.bf16.mxu0 0
    %1166 = vmatpush1.bf16.msra.mxu0 0
    %1167 = vmatprep.subr.bf16.mxu0 0
    %1168 = vmatpush1.bf16.msra.mxu0 %v1151
    %1169 = vmatprep.subr.bf16.mxu0 0
    %1170 = vmatpush2.bf16.msra.mxu0 0
    %1171 = vmatprep.subr.bf16.mxu0 0
    %1172 = vmatpush2.bf16.msra.mxu0 0
    %1173 = vmatprep.subr.bf16.mxu0 0
    %1174 = vmatpush2.bf16.msra.mxu0 0
    %1175 = vmatprep.subr.bf16.mxu0 0
    %1176 = vmatpush2.bf16.msra.mxu0 0
    %1177 = vmatprep.subr.bf16.mxu0 0
    %1178 = vmatpush2.bf16.msra.mxu0 0
    %1179 = vmatprep.subr.bf16.mxu0 0
    %1180 = vmatpush2.bf16.msra.mxu0 0
    %1181 = vmatprep.subr.bf16.mxu0 0
    %1182 = vmatpush2.bf16.msra.mxu0 0
    %1183 = vmatprep.subr.bf16.mxu0 0
    %1184 = vmatpush2.bf16.msra.mxu0 0
    %1185 = vmatprep.mubr.bf16.mxu0 0
    %1186 = vmatmul.mubr.bf16.gmra.mxu0 %v1148
    %v1187 = vpop.f32.mrf.mxu0
    %v1188 = vadd.f32 0.0, %v1187
    %v1189 = vpop.f32.mrf.mxu0
    %v1190 = vpop.f32.mrf.mxu0
    %v1191 = vpop.f32.mrf.mxu0
    %1192 = vdwg.mxu0
    %v1193 = vpack.c.bf16 %v1188, %v1078
    %v1194 = vld [vmem:[%s5 + $0xc] sm:$0xf]
    %v1196 = vsel %vm166, %v1193, 0
    %v1199 = vsel %vm230, %v1194, 0
    %1201 = vmatprep.subr.bf16.mxu0 0
    %1202 = vmatpush1.bf16.msra.mxu0 0
    %1203 = vmatprep.subr.bf16.mxu0 0
    %1204 = vmatpush1.bf16.msra.mxu0 0
    %1205 = vmatprep.subr.bf16.mxu0 0
    %1206 = vmatpush1.bf16.msra.mxu0 0
    %1207 = vmatprep.subr.bf16.mxu0 0
    %1208 = vmatpush1.bf16.msra.mxu0 0
    %1209 = vmatprep.subr.bf16.mxu0 0
    %1210 = vmatpush1.bf16.msra.mxu0 0
    %1211 = vmatprep.subr.bf16.mxu0 0
    %1212 = vmatpush1.bf16.msra.mxu0 0
    %1213 = vmatprep.subr.bf16.mxu0 0
    %1214 = vmatpush1.bf16.msra.mxu0 0
    %1215 = vmatprep.subr.bf16.mxu0 0
    %1216 = vmatpush1.bf16.msra.mxu0 %v1199
    %1217 = vmatprep.subr.bf16.mxu0 0
    %1218 = vmatpush2.bf16.msra.mxu0 0
    %1219 = vmatprep.subr.bf16.mxu0 0
    %1220 = vmatpush2.bf16.msra.mxu0 0
    %1221 = vmatprep.subr.bf16.mxu0 0
    %1222 = vmatpush2.bf16.msra.mxu0 0
    %1223 = vmatprep.subr.bf16.mxu0 0
    %1224 = vmatpush2.bf16.msra.mxu0 0
    %1225 = vmatprep.subr.bf16.mxu0 0
    %1226 = vmatpush2.bf16.msra.mxu0 0
    %1227 = vmatprep.subr.bf16.mxu0 0
    %1228 = vmatpush2.bf16.msra.mxu0 0
    %1229 = vmatprep.subr.bf16.mxu0 0
    %1230 = vmatpush2.bf16.msra.mxu0 0
    %1231 = vmatprep.subr.bf16.mxu0 0
    %1232 = vmatpush2.bf16.msra.mxu0 0
    %1233 = vmatprep.mubr.bf16.mxu0 0
    %1234 = vmatmul.mubr.bf16.gmra.mxu0 %v1196
    %v1235 = vpop.f32.mrf.mxu0
    %v1236 = vadd.f32 0.0, %v1235
    %v1237 = vpop.f32.mrf.mxu0
    %v1238 = vpop.f32.mrf.mxu0
    %v1239 = vadd.f32 0.0, %v1238
    %v1240 = vpop.f32.mrf.mxu0
    %1241 = vdwg.mxu0
    %v1242 = vadd.f32 %v971, %v1236
    %v1243 = vadd.f32 %v972, %v1239
    %v1244 = vadd.f32 %v46, %v1242
    %v1245 = vadd.f32 %v47, %v1243
    %v1246 = vld [vmem:[%s6] sm:$0x1]
    %v1248 = vlaneseq
    %v1249 = vshrl.u32 %v1248, 7
    %v1250 = vsub.s32 0, %v1249
    %v1251 = vrot.slane %v1246, %v1250
    %v1253 = vadd.f32 %v1244, %v1251
    %v1254 = vadd.f32 %v1245, %v1251
    %v1255 = vld [vmem:[%s7] sm:$0x1]
    %v1256 = vld [vmem:[%s8] sm:$0x1]
    %v1257 = vsel %vm50, %v1253, 0.0
    %1258 = vadd.xlane.f32.xlu0 %v1257
    %v1259 = vpop.xlane.xlu0 %1258
    %v1260 = vsel %vm50, %v1254, 0.0
    %1261 = vadd.xlane.f32.xlu0 %v1260
    %v1262 = vpop.xlane.xlu0 %1261
    %v1263 = vmul.f32 %v1259, %v57
    %v1264 = vmul.f32 %v1262, %v57
    %v1265 = vsub.f32 %v1253, %v1263
    %v1266 = vsub.f32 %v1254, %v1264
    %v1267 = vmul.f32 %v1265, %v1265
    %v1268 = vmul.f32 %v1266, %v1266
    %v1269 = vsel %vm50, %v1267, 0.0
    %1270 = vadd.xlane.f32.xlu0 %v1269
    %v1271 = vpop.xlane.xlu0 %1270
    %v1272 = vsel %vm50, %v1268, 0.0
    %1273 = vadd.xlane.f32.xlu0 %v1272
    %v1274 = vpop.xlane.xlu0 %1273
    %v1275 = vmul.f32 %v1271, %v57
    %v1276 = vmul.f32 %v1274, %v57
    %v1277 = vadd.f32 %v1275, 1e-05
    %v1278 = vadd.f32 %v1276, 1e-05
    %v1279 = vrsqrt.pop %v1277
    %v1280 = vrsqrt.pop %v1278
    %v1281 = vmul.f32 %v1265, %v1279
    %v1282 = vmul.f32 %v1266, %v1280
    %v1284 = vlaneseq
    %v1285 = vshrl.u32 %v1284, 7
    %v1286 = vsub.s32 0, %v1285
    %v1287 = vrot.slane %v1255, %v1286
    %v1289 = vmul.f32 %v1281, %v1287
    %v1290 = vmul.f32 %v1282, %v1287
    %v1292 = vlaneseq
    %v1293 = vshrl.u32 %v1292, 7
    %v1294 = vsub.s32 0, %v1293
    %v1295 = vrot.slane %v1256, %v1294
    %v1297 = vadd.f32 %v1289, %v1295
    %v1298 = vadd.f32 %v1290, %v1295
    %v1299 = vpack.c.bf16 %v1298, %v1297
    %v1300 = vld [vmem:[%s9] sm:$0xf]
    %v1301 = vld [vmem:[%s9 + $0x4] sm:$0xf]
    %v1302 = vld [vmem:[%s9 + $0x8] sm:$0xf]
    %v1303 = vld [vmem:[%s9 + $0xc] sm:$0xf]
    %v1304 = vld [vmem:[%s10] sm:$0x1]
    %v1306 = vlaneseq
    %v1307 = vshrl.u32 %v1306, 7
    %v1308 = vsub.s32 0, %v1307
    %v1309 = vrot.slane %v1304, %v1308
    %v1315 = vunpack.c.l.b16 %v1300
    %v1316 = vunpack.c.l.b16 %v1301
    %v1317 = vunpack.c.l.b16 %v1302
    %v1318 = vunpack.c.l.b16 %v1303
    %v1319 = vpack.c.b16 %v1316, %v1315
    %v1320 = vpack.c.b16 %v1318, %v1317
    %v1324 = vsel %vm50, %v1299, 0
    %1326 = vmatprep.subr.bf16.mxu0 0
    %1327 = vmatpush1.bf16.msra.mxu0 0
    %1328 = vmatprep.subr.bf16.mxu0 0
    %1329 = vmatpush1.bf16.msra.mxu0 0
    %1330 = vmatprep.subr.bf16.mxu0 0
    %1331 = vmatpush1.bf16.msra.mxu0 0
    %1332 = vmatprep.subr.bf16.mxu0 0
    %1333 = vmatpush1.bf16.msra.mxu0 0
    %1334 = vmatprep.subr.bf16.mxu0 0
    %1335 = vmatpush1.bf16.msra.mxu0 0
    %1336 = vmatprep.subr.bf16.mxu0 0
    %1337 = vmatpush1.bf16.msra.mxu0 0
    %1338 = vmatprep.subr.bf16.mxu0 0
    %1339 = vmatpush1.bf16.msra.mxu0 %v1320
    %1340 = vmatprep.subr.bf16.mxu0 0
    %1341 = vmatpush1.bf16.msra.mxu0 %v1319
    %1342 = vmatprep.subr.bf16.mxu0 0
    %1343 = vmatpush2.bf16.msra.mxu0 0
    %1344 = vmatprep.subr.bf16.mxu0 0
    %1345 = vmatpush2.bf16.msra.mxu0 0
    %1346 = vmatprep.subr.bf16.mxu0 0
    %1347 = vmatpush2.bf16.msra.mxu0 0
    %1348 = vmatprep.subr.bf16.mxu0 0
    %1349 = vmatpush2.bf16.msra.mxu0 0
    %1350 = vmatprep.subr.bf16.mxu0 0
    %1351 = vmatpush2.bf16.msra.mxu0 0
    %1352 = vmatprep.subr.bf16.mxu0 0
    %1353 = vmatpush2.bf16.msra.mxu0 0
    %1354 = vmatprep.subr.bf16.mxu0 0
    %1355 = vmatpush2.bf16.msra.mxu0 0
    %1356 = vmatprep.subr.bf16.mxu0 0
    %1357 = vmatpush2.bf16.msra.mxu0 0
    %1358 = vmatprep.mubr.bf16.mxu0 0
    %1359 = vmatmul.mubr.bf16.gmra.mxu0 %v1324
    %v1360 = vpop.f32.mrf.mxu0
    %v1361 = vadd.f32 %v1309, %v1360
    %v1362 = vpop.f32.mrf.mxu0
    %v1363 = vpop.f32.mrf.mxu0
    %v1364 = vadd.f32 %v1309, %v1363
    %v1365 = vpop.f32.mrf.mxu0
    %1366 = vdwg.mxu0
    %v1367 = vmax.f32 %v1361, 0.0
    %v1368 = vmax.f32 %v1364, 0.0
    %v1369 = vpack.c.bf16 %v1368, %v1367
    %v1370 = vld [vmem:[%s11] sm:$0xf]
    %v1371 = vld [vmem:[%s11 + $0x4] sm:$0xf]
    %v1372 = vld [vmem:[%s11 + $0x8] sm:$0xf]
    %v1373 = vld [vmem:[%s11 + $0xc] sm:$0xf]
    %v1374 = vld [vmem:[%s11 + $0x10] sm:$0xf]
    %v1375 = vld [vmem:[%s11 + $0x14] sm:$0xf]
    %v1376 = vld [vmem:[%s11 + $0x18] sm:$0xf]
    %v1377 = vld [vmem:[%s11 + $0x1c] sm:$0xf]
    %v1378 = vld [vmem:[%s11 + $0x20] sm:$0xf]
    %v1379 = vld [vmem:[%s11 + $0x24] sm:$0xf]
    %v1380 = vld [vmem:[%s11 + $0x28] sm:$0xf]
    %v1381 = vld [vmem:[%s11 + $0x2c] sm:$0xf]
    %v1382 = vld [vmem:[%s11 + $0x30] sm:$0xf]
    %v1383 = vld [vmem:[%s11 + $0x34] sm:$0xf]
    %v1384 = vld [vmem:[%s11 + $0x38] sm:$0xf]
    %v1385 = vld [vmem:[%s11 + $0x3c] sm:$0xf]
    %v1386 = vld [vmem:[%s12] sm:$0x1]
    %v1388 = vlaneseq
    %v1389 = vshrl.u32 %v1388, 7
    %v1390 = vsub.s32 0, %v1389
    %v1391 = vrot.slane %v1386, %v1390
    %v1409 = vunpack.c.l.b16 %v1370
    %v1410 = vunpack.c.l.b16 %v1371
    %v1411 = vunpack.c.l.b16 %v1372
    %v1412 = vunpack.c.l.b16 %v1373
    %v1413 = vunpack.c.l.b16 %v1374
    %v1414 = vunpack.c.l.b16 %v1375
    %v1415 = vunpack.c.l.b16 %v1376
    %v1416 = vunpack.c.l.b16 %v1377
    %v1417 = vunpack.c.l.b16 %v1378
    %v1418 = vunpack.c.l.b16 %v1379
    %v1419 = vunpack.c.l.b16 %v1380
    %v1420 = vunpack.c.l.b16 %v1381
    %v1421 = vunpack.c.l.b16 %v1382
    %v1422 = vunpack.c.l.b16 %v1383
    %v1423 = vunpack.c.l.b16 %v1384
    %v1424 = vunpack.c.l.b16 %v1385
    %v1425 = vpack.c.b16 %v1410, %v1409
    %v1426 = vpack.c.b16 %v1412, %v1411
    %v1427 = vpack.c.b16 %v1414, %v1413
    %v1428 = vpack.c.b16 %v1416, %v1415
    %v1429 = vpack.c.b16 %v1418, %v1417
    %v1430 = vpack.c.b16 %v1420, %v1419
    %v1431 = vpack.c.b16 %v1422, %v1421
    %v1432 = vpack.c.b16 %v1424, %v1423
    %1441 = vmatprep.subr.bf16.mxu0 0
    %1442 = vmatpush1.bf16.msra.mxu0 %v1432
    %1443 = vmatprep.subr.bf16.mxu0 0
    %1444 = vmatpush1.bf16.msra.mxu0 %v1431
    %1445 = vmatprep.subr.bf16.mxu0 0
    %1446 = vmatpush1.bf16.msra.mxu0 %v1430
    %1447 = vmatprep.subr.bf16.mxu0 0
    %1448 = vmatpush1.bf16.msra.mxu0 %v1429
    %1449 = vmatprep.subr.bf16.mxu0 0
    %1450 = vmatpush1.bf16.msra.mxu0 %v1428
    %1451 = vmatprep.subr.bf16.mxu0 0
    %1452 = vmatpush1.bf16.msra.mxu0 %v1427
    %1453 = vmatprep.subr.bf16.mxu0 0
    %1454 = vmatpush1.bf16.msra.mxu0 %v1426
    %1455 = vmatprep.subr.bf16.mxu0 0
    %1456 = vmatpush1.bf16.msra.mxu0 %v1425
    %1457 = vmatprep.subr.bf16.mxu0 0
    %1458 = vmatpush2.bf16.msra.mxu0 0
    %1459 = vmatprep.subr.bf16.mxu0 0
    %1460 = vmatpush2.bf16.msra.mxu0 0
    %1461 = vmatprep.subr.bf16.mxu0 0
    %1462 = vmatpush2.bf16.msra.mxu0 0
    %1463 = vmatprep.subr.bf16.mxu0 0
    %1464 = vmatpush2.bf16.msra.mxu0 0
    %1465 = vmatprep.subr.bf16.mxu0 0
    %1466 = vmatpush2.bf16.msra.mxu0 0
    %1467 = vmatprep.subr.bf16.mxu0 0
    %1468 = vmatpush2.bf16.msra.mxu0 0
    %1469 = vmatprep.subr.bf16.mxu0 0
    %1470 = vmatpush2.bf16.msra.mxu0 0
    %1471 = vmatprep.subr.bf16.mxu0 0
    %1472 = vmatpush2.bf16.msra.mxu0 0
    %1473 = vmatprep.mubr.bf16.mxu0 0
    %1474 = vmatmul.mubr.bf16.gmra.mxu0 %v1369
    %v1475 = vpop.f32.mrf.mxu0
    %v1476 = vadd.f32 %v1391, %v1475
    %v1477 = vpop.f32.mrf.mxu0
    %v1478 = vpop.f32.mrf.mxu0
    %v1479 = vadd.f32 %v1391, %v1478
    %v1480 = vpop.f32.mrf.mxu0
    %1481 = vdwg.mxu0
    %v1482 = vadd.f32 %v1253, %v1476
    %v1483 = vadd.f32 %v1254, %v1479
    %1484 = vst.msk [vmem:[#allocation2] sm:$0xff] %vm50, %v1482
    %1485 = vst.msk [vmem:[#allocation2 + $0x8] sm:$0xff] %vm50, %v1483
    // Predicated region
    $region54: #{tpu_custom_call.1} parent=1 // pred_check
      _
    $region55: #{tpu_custom_call.1} parent=1 // pred_check_branch
      %1487 = sbr.rel (0) target = $region57
    $region56: #{tpu_custom_call.1} parent=1 // pred_region
      %s1489 = ssub.s32 256, 256
      %1490 = vsyncadd [#allocation3], %s1489
      %s1491 = sshll.u32 [#allocation2], 4
      %s1492 = int_to_ptr.vmem [resolvable:$true] %s1491
      %1497 = dma.vmem_to_hbm [thread:$0]  %s1492, 256, %s13, [#allocation3], 128, 128, 8
    $region57: #{tpu_custom_call.1} parent=1 // pred_fallthru
      _
    // Predicated region
    $region58: #{tpu_custom_call.1} parent=1 // pred_check
      _
    $region59: #{tpu_custom_call.1} parent=1 // pred_check_branch
      %1499 = sbr.rel (0) target = $region61
    $region60: #{tpu_custom_call.1} parent=1 // pred_region
      %1500 = dma.done [#allocation3], 256
    $region61: #{tpu_custom_call.1} parent=1 // pred_fallthru
      _
    %1501 = vsyncpa [#allocation3], 1

</llo_original>
